<compile_context>
chip_gen: v7x
topology: tpu7x:2x2x1
jax: 0.10.0
libtpu: 0.0.40
codegen_flags: <defaults>
</compile_context>

<pallas_src>
import numpy as np
import jax
import jax.numpy as jnp
from jax import lax
from jax.experimental import pallas as pl
from jax.experimental.pallas import tpu as pltpu

# ----------------------- model hyper-parameters (small) -----------------------
NUM_GENES = 32
DIM_EMBEDDING = 16            # must be a multiple of 4
DIM_EM_ISCENTRAL = 4
DIM_U_INT = 3
DIM_U_SPL = 5
FLAG_USE_INT_U = True
FLAG_USE_SPL_U = True
DIM_TF = DIM_EMBEDDING + DIM_EM_ISCENTRAL \
    + (DIM_U_INT if FLAG_USE_INT_U else 0) \
    + (DIM_U_SPL if FLAG_USE_SPL_U else 0)          # 28 (logical)
DIM_TF_PAD = 32               # feature dim padded to 32 lanes (zero-padded weights)
MAXSIZE_SUBGRAPH = 16         # Linformer input_size (Padder pads seq to this)
LINFORMER_DIM_K = 8           # low-rank projection of the sequence dim
N_NODES = 12                  # subgraph size  (<= MAXSIZE_SUBGRAPH)
BATCH_SIZE = 4                # number of "central" nodes
N_TOTAL = 20                  # nodes in the whole graph (> N_NODES, per assert)
LEAKY_SLOPE = 0.01

D = DIM_TF_PAD                # 32
G = NUM_GENES                 # 32 (== D; the weight slab assumes NUM_GENES <= DIM_TF_PAD rows)
K = LINFORMER_DIM_K           # 8
S = MAXSIZE_SUBGRAPH          # 16

# ----- weight-slab column offsets (bf16, [D, W_COLS]) -----
OFF_WENC = 0                          # [32, 32]   encoder weight (cols 16..31 zero)
OFF_QKV = OFF_WENC + D                # [32, 192]  wq|wk|wv  for int then spl
OFF_WO = OFF_QKV + 6 * D              # [32, 64]   wo_int | wo_spl
OFF_W1 = OFF_WO + 2 * D               # [32, 64]   ff w1_int | w1_spl
OFF_W2 = OFF_W1 + 2 * D               # [32, 64]   ff w2_int | w2_spl
OFF_H1S = OFF_W2 + 2 * D              # [32, 128]  (hw1|hws)_int | (hw1|hws)_spl
OFF_HW2 = OFF_H1S + 2 * (D + G)       # [32, 64]   hw2_int | hw2_spl
OFF_EF = OFF_HW2 + 2 * G              # rows 0:8, [8, 64] E_int|F_int|E_spl|F_spl
W_COLS = 768                          # 672 raw, padded to a multiple of 128

# ----- bias-slab column offsets (f32, [1, B_COLS]) -----
BOFF_ENC = 0                          # 32
BOFF_B1 = BOFF_ENC + D                # 64  (b1_int | b1_spl)
BOFF_B2 = BOFF_B1 + 2 * D             # 64  (b2_int | b2_spl)
BOFF_H1S = BOFF_B2 + 2 * D            # 128 (hb1|hbs)_int | (hb1|hbs)_spl
BOFF_HB2 = BOFF_H1S + 2 * (D + G)     # 64  (hb2_int | hb2_spl)
B_COLS = 384                          # 352 raw, padded


def _leaky(x):
    return jnp.where(x >= 0.0, x, LEAKY_SLOPE * x)


# --------------------------- the single fused kernel ---------------------------
def _fused_kernel(nrows_ref, data_ref, w_ref, b_ref, out_ref):
    n = nrows_ref[pl.program_id(0)]                   # real (non-padded) rows of this subgraph

    data = data_ref[0]                                # [16, 64] f32
    xcnt = data[:, 0:G]                               # raw counts (padded rows/cols are 0)
    add = data[:, G:G + D]                            # pe + central-emb + u_int + u_spl

    def w(col, width):                                # static bf16 weight slice (free)
        return w_ref[:, col:col + width]

    def bias(col, width):                             # static f32 bias slice
        return b_ref[:, col:col + width]

    def dot(a, bm):                                   # bf16 MXU matmul, f32 accumulate
        return jnp.dot(a.astype(jnp.bfloat16), bm.astype(jnp.bfloat16),
                       preferred_element_type=jnp.float32)

    # ---- encoder + additive embeddings; Padder row mask from the runtime scalar n ----
    xe = dot(jnp.log1p(xcnt), w(OFF_WENC, D)) + bias(BOFF_ENC, D)
    row = lax.broadcasted_iota(jnp.int32, (S, 1), 0)
    row_mask = (row < n).astype(jnp.float32)
    em = (xe + add) * row_mask                                        # [16, 32]

    # ---- q/k/v of BOTH branches in a single MXU op ----
    qkv = dot(em, w(OFF_QKV, 6 * D))                                  # [16, 192]
    scale = 1.0 / np.sqrt(DIM_TF)

    outs = []
    for br in range(2):                               # unrolled: 0 = int, 1 = spl
        q = qkv[:, br * 3 * D + 0:br * 3 * D + D]
        k = qkv[:, br * 3 * D + D:br * 3 * D + 2 * D]
        v = qkv[:, br * 3 * D + 2 * D:br * 3 * D + 3 * D]

        # ---- single-layer single-head Linformer block (stand-in, see TODO) ----
        e_m = w_ref[0:K, OFF_EF + (2 * br) * S:OFF_EF + (2 * br) * S + S]        # [8, 16]
        f_m = w_ref[0:K, OFF_EF + (2 * br + 1) * S:OFF_EF + (2 * br + 1) * S + S]
        kp = dot(e_m, k)                                              # [8, 32]
        vp = dot(f_m, v)                                              # [8, 32]
        s = lax.dot_general(q.astype(jnp.bfloat16), kp.astype(jnp.bfloat16),
                            (((1,), (1,)), ((), ())),
                            preferred_element_type=jnp.float32) * scale          # [16, 8]
        s = s - jnp.max(s, axis=-1, keepdims=True)
        p = jnp.exp(s)
        p = p / jnp.sum(p, axis=-1, keepdims=True)                    # exact softmax
        attn = dot(p, vp)                                             # [16, 32]
        h = em + dot(attn, w(OFF_WO + br * D, D))
        ff = jax.nn.gelu(dot(h, w(OFF_W1 + br * D, D)) + bias(BOFF_B1 + br * D, D))
        tf = h + dot(ff, w(OFF_W2 + br * D, D)) + bias(BOFF_B2 + br * D, D)

        # ---- heads: mu hidden layer and sigma head share one matmul ----
        h0 = _leaky(tf)
        h1s = dot(h0, w(OFF_H1S + br * (D + G), D + G)) \
            + bias(BOFF_H1S + br * (D + G), D + G)                    # [16, 64]
        h1 = _leaky(h1s[:, 0:D])
        mux = dot(h1, w(OFF_HW2 + br * G, G)) + bias(BOFF_HB2 + br * G, G)
        # torch.clamp(v*oneon, min=1e-5, max=x_cnt): max wins when x_cnt == 0
        mux = jnp.minimum(jnp.maximum(mux, 1e-5), xcnt)
        sig = jnp.maximum(h1s[:, D:D + G], 1e-5)
        outs += [mux, sig]

    # lane-dense output slab: muxint | sigmaxint | muxspl | sigmaxspl = 128 lanes
    out_ref[0] = jnp.concatenate(outs, axis=-1)


def _run_kernel(nrows, data, w_slab, b_slab):
    B = data.shape[0]
    grid_spec = pltpu.PrefetchScalarGridSpec(
        num_scalar_prefetch=1,
        grid=(B,),
        in_specs=[
            pl.BlockSpec((1, S, 2 * D), lambda i, nr: (i, 0, 0)),     # per-subgraph data
            pl.BlockSpec((D, W_COLS), lambda i, nr: (0, 0)),          # weights, VMEM-resident
            pl.BlockSpec((1, B_COLS), lambda i, nr: (0, 0)),          # biases, VMEM-resident
        ],
        out_specs=pl.BlockSpec((1, S, 4 * G), lambda i, nr: (i, 0, 0)),
    )
    return pl.pallas_call(
        _fused_kernel,
        out_shape=jax.ShapeDtypeStruct((B, S, 4 * G), jnp.float32),
        grid_spec=grid_spec,
        compiler_params=pltpu.CompilerParams(
            dimension_semantics=("parallel",)),
        cost_estimate=pl.CostEstimate(flops=700_000 * B,
                                      transcendentals=2_000 * B,
                                      bytes_accessed=12_500 * B + 51_000),
    )(nrows, data, w_slab, b_slab)


# ------------------------------- glue (jitted JAX) ------------------------------
def _position_add_slab(emb_central, x_cnt_pad, y_pad, n_id_pad, xy_abs, batch_size, n):
    """Build one [16, 64] data slab: x_cnt | (pe + central-emb + u_int + u_spl)."""
    valid = (jnp.arange(S) < n)[:, None]                              # [16, 1]
    # CellPLM-style positional encoding (masked min/max so pad rows don't skew it)
    xy = xy_abs[n_id_pad, :]                                          # [16, 2]
    mn = jnp.min(jnp.where(valid, xy, jnp.inf), axis=0, keepdims=True)
    xy = xy - mn
    mx = jnp.max(jnp.where(valid, xy, -jnp.inf), axis=0, keepdims=True)
    xy = 100.0 * xy / jnp.maximum(mx, 1e-4)
    xy = jnp.where(valid, xy, 0.0)                                    # keep sin/cos finite on pad rows
    dby4 = DIM_EMBEDDING // 4
    denum = jnp.exp(jnp.arange(dby4, dtype=jnp.float32) / dby4 * np.log(10000.0))[None, :]
    pe = jnp.concatenate([jnp.sin(xy[:, 0:1] / denum), jnp.cos(xy[:, 0:1] / denum),
                          jnp.sin(xy[:, 1:2] / denum), jnp.cos(xy[:, 1:2] / denum)], axis=1)
    idx_central = (jnp.arange(S) < batch_size).astype(jnp.int32)      # [1]*bs + [0]*rest
    em_c = emb_central[idx_central]                                   # [16, 4]
    ten_u_int = y_pad[:, :DIM_U_INT]
    ten_u_spl = y_pad[:, DIM_U_INT:]
    add = jnp.concatenate([pe, em_c, ten_u_int, ten_u_spl], axis=1)   # [16, 28]
    add = jnp.where(valid, add, 0.0)
    add = jnp.pad(add, ((0, 0), (0, D - DIM_TF)))                     # [16, 32]
    xcnt = jnp.where(valid, x_cnt_pad, 0.0)
    return jnp.concatenate([xcnt, add], axis=1)                       # [16, 64]


@jax.jit
def _forward_batched_jit(packed, x_cnt_pad, y_pad, n_id_pad, nrows, xy_abs, batch_size):
    data = jax.vmap(_position_add_slab,
                    in_axes=(None, 0, 0, 0, None, None, 0))(
        packed['emb_central'], x_cnt_pad, y_pad, n_id_pad, xy_abs, batch_size, nrows)
    slab = _run_kernel(nrows.astype(jnp.int32), data, packed['w'], packed['b'])
    g = G
    return dict(muxint=slab[:, :, 0 * g:1 * g],
                sigmaxint=slab[:, :, 1 * g:2 * g],
                muxspl=slab[:, :, 2 * g:3 * g],
                sigmaxspl=slab[:, :, 3 * g:4 * g])


@jax.jit
def _forward_single_jit(packed, x_cnt, y, n_id, xy_abs, batch_size):
    n = x_cnt.shape[0]
    pad = S - n
    x_cnt_pad = jnp.pad(x_cnt, ((0, pad), (0, 0)))[None]
    y_pad = jnp.pad(y, ((0, pad), (0, 0)))[None]
    n_id_pad = jnp.pad(n_id, (0, pad))[None]
    nrows = jnp.full((1,), n, jnp.int32)
    d = _forward_batched_jit(packed, x_cnt_pad, y_pad, n_id_pad, nrows, xy_abs, batch_size)
    return {k: v[0, :n] for k, v in d.items()}


def disentangler_forward(packed, x_cnt, y, n_id, xy_abs, batch_size,
                         prob_maskknowngenes=0.0):
    """Single-subgraph forward, same semantics as DisentanglerTwoSep.forward."""
    assert prob_maskknowngenes == 0.0
    assert xy_abs.shape[0] > x_cnt.shape[0]
    n = x_cnt.shape[0]
    d = _forward_single_jit(packed, x_cnt, y, n_id, xy_abs, batch_size)
    d['ten_out_imputer'] = 0.0
    d['loss_imputex'] = None
    d['ten_manually_masked'] = jnp.zeros((n,), dtype=bool)            # always all-False
    return d


def disentangler_forward_batched(packed, x_cnt_pad, y_pad, n_id_pad, nrows, xy_abs,
                                 batch_size, prob_maskknowngenes=0.0):
    """Batched forward over B subgraphs (inputs pre-padded to MAXSIZE_SUBGRAPH rows)."""
    assert prob_maskknowngenes == 0.0
    d = _forward_batched_jit(packed, x_cnt_pad, y_pad, n_id_pad, nrows, xy_abs, batch_size)
    d['ten_out_imputer'] = 0.0
    d['loss_imputex'] = None
    d['ten_manually_masked'] = jnp.zeros(x_cnt_pad.shape[:2], dtype=bool)
    return d


# ------------------------------ deterministic init ------------------------------
def init_params(key):
    keys = iter(jax.random.split(key, 40))

    def w(shape, scale=0.1):
        return (scale * jax.random.normal(next(keys), shape)).astype(jnp.float32)

    def linformer_params():
        return dict(
            wq=w((DIM_TF, DIM_TF)), wk=w((DIM_TF, DIM_TF)),
            wv=w((DIM_TF, DIM_TF)), wo=w((DIM_TF, DIM_TF)),
            E=w((K, S)), F=w((K, S)),
            w1=w((DIM_TF, DIM_TF)), b1=w((1, DIM_TF)),
            w2=w((DIM_TF, DIM_TF)), b2=w((1, DIM_TF)),
        )

    def head_params():
        return dict(
            w1=w((DIM_TF, DIM_TF)), b1=w((1, DIM_TF)),
            w2=w((DIM_TF, NUM_GENES)), b2=w((1, NUM_GENES)),
            ws=w((DIM_TF, NUM_GENES)), bs=w((1, NUM_GENES)),
        )

    return dict(
        w_enc=w((NUM_GENES, DIM_EMBEDDING)),       # stored [in, out] (= torch W^T)
        b_enc=w((1, DIM_EMBEDDING)),
        emb_central=w((2, DIM_EM_ISCENTRAL)),      # nn.Embedding(2, dim)
        lin_int=linformer_params(),
        lin_spl=linformer_params(),
        head_int=head_params(),
        head_spl=head_params(),
    )


def _pad2(a, rows, cols):
    r, c = a.shape
    return jnp.pad(a, ((0, rows - r), (0, cols - c)))


def pack_params(p):
    """Pack everything constant into one bf16 weight slab + one f32 bias slab."""
    W = jnp.zeros((D, W_COLS), jnp.float32)
    Bv = jnp.zeros((1, B_COLS), jnp.float32)

    W = W.at[:, OFF_WENC:OFF_WENC + D].set(_pad2(p['w_enc'], D, D))
    Bv = Bv.at[:, BOFF_ENC:BOFF_ENC + D].set(_pad2(p['b_enc'], 1, D))

    for br, (lk, hk) in enumerate((('lin_int', 'head_int'), ('lin_spl', 'head_spl'))):
        lp, hp = p[lk], p[hk]
        qkv = jnp.concatenate([_pad2(lp['wq'], D, D), _pad2(lp['wk'], D, D),
                               _pad2(lp['wv'], D, D)], axis=1)                  # [32, 96]
        W = W.at[:, OFF_QKV + br * 3 * D:OFF_QKV + (br + 1) * 3 * D].set(qkv)
        W = W.at[:, OFF_WO + br * D:OFF_WO + (br + 1) * D].set(_pad2(lp['wo'], D, D))
        W = W.at[:, OFF_W1 + br * D:OFF_W1 + (br + 1) * D].set(_pad2(lp['w1'], D, D))
        W = W.at[:, OFF_W2 + br * D:OFF_W2 + (br + 1) * D].set(_pad2(lp['w2'], D, D))
        W = W.at[0:K, OFF_EF + (2 * br) * S:OFF_EF + (2 * br) * S + S].set(lp['E'])
        W = W.at[0:K, OFF_EF + (2 * br + 1) * S:OFF_EF + (2 * br + 1) * S + S].set(lp['F'])
        h1s = jnp.concatenate([_pad2(hp['w1'], D, D), _pad2(hp['ws'], D, G)], axis=1)
        W = W.at[:, OFF_H1S + br * (D + G):OFF_H1S + (br + 1) * (D + G)].set(h1s)
        W = W.at[:, OFF_HW2 + br * G:OFF_HW2 + (br + 1) * G].set(_pad2(hp['w2'], D, G))

        Bv = Bv.at[:, BOFF_B1 + br * D:BOFF_B1 + (br + 1) * D].set(_pad2(lp['b1'], 1, D))
        Bv = Bv.at[:, BOFF_B2 + br * D:BOFF_B2 + (br + 1) * D].set(_pad2(lp['b2'], 1, D))
        hb1s = jnp.concatenate([_pad2(hp['b1'], 1, D), _pad2(hp['bs'], 1, G)], axis=1)
        Bv = Bv.at[:, BOFF_H1S + br * (D + G):BOFF_H1S + (br + 1) * (D + G)].set(hb1s)
        Bv = Bv.at[:, BOFF_HB2 + br * G:BOFF_HB2 + (br + 1) * G].set(_pad2(hp['b2'], 1, G))

    return dict(w=W.astype(jnp.bfloat16),            # bf16 MXU inputs
                b=Bv,                                 # f32 biases (added post-matmul)
                emb_central=p['emb_central'])


# ------------------------------------ main --------------------------------------
if __name__ == "__main__":
    key = jax.random.PRNGKey(0)
    k_params, k_x, k_y, k_xy, k_nid, k_bx, k_by, k_bnid = jax.random.split(key, 8)

    params = init_params(k_params)
    packed = pack_params(params)

    # ---- single-subgraph path (original torch-module semantics) ----
    x_cnt = jax.random.randint(k_x, (N_NODES, NUM_GENES), 0, 5).astype(jnp.float32)
    y = jax.random.normal(k_y, (N_NODES, DIM_U_INT + DIM_U_SPL), dtype=jnp.float32)
    xy_abs = 10.0 * jax.random.uniform(k_xy, (N_TOTAL, 2), dtype=jnp.float32)
    n_id = jax.random.permutation(k_nid, N_TOTAL)[:N_NODES]

    out = disentangler_forward(packed, x_cnt, y, n_id, xy_abs, BATCH_SIZE,
                               prob_maskknowngenes=0.0)
    for name in ("muxint", "muxspl", "sigmaxint", "sigmaxspl"):
        jax.block_until_ready(out[name])
        assert out[name].shape == (N_NODES, NUM_GENES)
        assert bool(jnp.all(jnp.isfinite(out[name])))

    # ---- batched path: 8 subgraphs of varying size pipelined on the grid ----
    NB = 8
    nrows = jnp.array([N_NODES, 16, 9, 7, 16, 11, 5, 13], dtype=jnp.int32)
    row_ok = (jnp.arange(MAXSIZE_SUBGRAPH)[None, :] < nrows[:, None])[..., None]
    x_cnt_b = jnp.where(
        row_ok,
        jax.random.randint(k_bx, (NB, MAXSIZE_SUBGRAPH, NUM_GENES), 0, 5).astype(jnp.float32),
        0.0)
    y_b = jax.random.normal(k_by, (NB, MAXSIZE_SUBGRAPH, DIM_U_INT + DIM_U_SPL),
                            dtype=jnp.float32)
    n_id_b = jax.random.randint(k_bnid, (NB, MAXSIZE_SUBGRAPH), 0, N_TOTAL)

    # make subgraph 0 of the batch identical to the single-subgraph call
    x_cnt_b = x_cnt_b.at[0].set(jnp.pad(x_cnt, ((0, MAXSIZE_SUBGRAPH - N_NODES), (0, 0))))
    y_b = y_b.at[0].set(jnp.pad(y, ((0, MAXSIZE_SUBGRAPH - N_NODES), (0, 0))))
    n_id_b = n_id_b.at[0].set(jnp.pad(n_id, (0, MAXSIZE_SUBGRAPH - N_NODES)))

    outb = disentangler_forward_batched(packed, x_cnt_b, y_b, n_id_b, nrows,
                                        xy_abs, BATCH_SIZE, prob_maskknowngenes=0.0)
    for name in ("muxint", "muxspl", "sigmaxint", "sigmaxspl"):
        jax.block_until_ready(outb[name])
        assert outb[name].shape == (NB, MAXSIZE_SUBGRAPH, NUM_GENES)
        assert bool(jnp.all(jnp.isfinite(outb[name])))
        # batched result for subgraph 0 must match the single-subgraph result
        np.testing.assert_allclose(np.asarray(outb[name][0, :N_NODES]),
                                   np.asarray(out[name]), rtol=1e-5, atol=1e-5)

    print("KERNEL_OK")
</pallas_src>

<mosaic_0001>
module attributes {stable_mosaic.version = 11 : i64} {
  func.func @_fused_kernel(%arg0: i32, %arg1: memref<1xi32, #tpu.memory_space<smem>>, %arg2: memref<1x16x64xf32, #tpu.memory_space<vmem>>, %arg3: memref<32x768xbf16, #tpu.memory_space<vmem>>, %arg4: memref<1x384xf32, #tpu.memory_space<vmem>>, %arg5: memref<1x16x128xf32, #tpu.memory_space<vmem>>) attributes {dimension_semantics = [#tpu.dimension_semantics<parallel>], iteration_bounds = array<i64: 1>, scalar_prefetch = 1 : i64, scratch_operands = 0 : i64, tpu.core_type = #tpu.core_type<tc>, window_params = [{transform_indices = @transform_0, window_bounds = array<i64: 1, 16, 64>}, {pipeline_mode = #tpu.pipeline_mode<synchronous>, transform_indices = @transform_1, window_bounds = array<i64: 32, 768>}, {pipeline_mode = #tpu.pipeline_mode<synchronous>, transform_indices = @transform_2, window_bounds = array<i64: 1, 384>}, {transform_indices = @transform_3, window_bounds = array<i64: 1, 16, 128>}]} {
    %0 = arith.index_cast %arg0 : i32 to index
    %1 = memref.load %arg1[%0] : memref<1xi32, #tpu.memory_space<smem>>
    %c0 = arith.constant 0 : index
    %c0_0 = arith.constant 0 : index
    %c0_1 = arith.constant 0 : index
    %2 = vector.load %arg2[%c0, %c0_0, %c0_1] : memref<1x16x64xf32, #tpu.memory_space<vmem>>, vector<1x16x64xf32>
    %3 = vector.shape_cast %2 : vector<1x16x64xf32> to vector<16x64xf32>
    %4 = vector.extract_strided_slice %3 {offsets = [0, 0], sizes = [16, 32], strides = [1, 1]} : vector<16x64xf32> to vector<16x32xf32>
    %5 = vector.extract_strided_slice %3 {offsets = [0, 32], sizes = [16, 32], strides = [1, 1]} : vector<16x64xf32> to vector<16x32xf32>
    %6 = math.log1p %4 : vector<16x32xf32>
    %c0_2 = arith.constant 0 : index
    %c0_3 = arith.constant 0 : index
    %7 = vector.load %arg3[%c0_2, %c0_3] : memref<32x768xbf16, #tpu.memory_space<vmem>>, vector<32x32xbf16>
    %8 = arith.truncf %6 : vector<16x32xf32> to vector<16x32xbf16>
    %cst = arith.constant dense<0.000000e+00> : vector<16x32xf32>
    %9 = tpu.matmul %8, %7, %cst {dimension_numbers = #tpu.dot_dimension_numbers<[1], [0], [0], [1], [0, 0, 1, 1], [], []>} : vector<16x32xbf16>, vector<32x32xbf16>, vector<16x32xf32> -> vector<16x32xf32>
    %c0_4 = arith.constant 0 : index
    %c0_5 = arith.constant 0 : index
    %10 = vector.load %arg4[%c0_4, %c0_5] : memref<1x384xf32, #tpu.memory_space<vmem>>, vector<1x32xf32>
    %11 = vector.broadcast %10 : vector<1x32xf32> to vector<16x32xf32>
    %12 = arith.addf %9, %11 : vector<16x32xf32>
    %13 = tpu.iota {dimensions = array<i32: 0>} : vector<16x1xi32>
    %14 = vector.broadcast %1 : i32 to vector<16x1xi32>
    %15 = arith.cmpi slt, %13, %14 : vector<16x1xi32>
    %16 = arith.extui %15 : vector<16x1xi1> to vector<16x1xi32>
    %17 = arith.sitofp %16 : vector<16x1xi32> to vector<16x1xf32>
    %18 = arith.addf %12, %5 : vector<16x32xf32>
    %19 = vector.broadcast %17 : vector<16x1xf32> to vector<16x32xf32>
    %20 = arith.mulf %18, %19 : vector<16x32xf32>
    %c0_6 = arith.constant 0 : index
    %c32 = arith.constant 32 : index
    %21 = vector.load %arg3[%c0_6, %c32] : memref<32x768xbf16, #tpu.memory_space<vmem>>, vector<32x192xbf16>
    %22 = arith.truncf %20 : vector<16x32xf32> to vector<16x32xbf16>
    %cst_7 = arith.constant dense<0.000000e+00> : vector<16x192xf32>
    %23 = tpu.matmul %22, %21, %cst_7 {dimension_numbers = #tpu.dot_dimension_numbers<[1], [0], [0], [1], [0, 0, 1, 1], [], []>} : vector<16x32xbf16>, vector<32x192xbf16>, vector<16x192xf32> -> vector<16x192xf32>
    %24 = vector.extract_strided_slice %23 {offsets = [0, 0], sizes = [16, 32], strides = [1, 1]} : vector<16x192xf32> to vector<16x32xf32>
    %25 = vector.extract_strided_slice %23 {offsets = [0, 32], sizes = [16, 32], strides = [1, 1]} : vector<16x192xf32> to vector<16x32xf32>
    %26 = vector.extract_strided_slice %23 {offsets = [0, 64], sizes = [16, 32], strides = [1, 1]} : vector<16x192xf32> to vector<16x32xf32>
    %c0_8 = arith.constant 0 : index
    %c608 = arith.constant 608 : index
    %27 = vector.load %arg3[%c0_8, %c608] : memref<32x768xbf16, #tpu.memory_space<vmem>>, vector<8x16xbf16>
    %c0_9 = arith.constant 0 : index
    %c624 = arith.constant 624 : index
    %28 = vector.load %arg3[%c0_9, %c624] : memref<32x768xbf16, #tpu.memory_space<vmem>>, vector<8x16xbf16>
    %29 = arith.truncf %25 : vector<16x32xf32> to vector<16x32xbf16>
    %cst_10 = arith.constant dense<0.000000e+00> : vector<8x32xf32>
    %30 = tpu.matmul %27, %29, %cst_10 {dimension_numbers = #tpu.dot_dimension_numbers<[1], [0], [0], [1], [0, 0, 1, 1], [], []>} : vector<8x16xbf16>, vector<16x32xbf16>, vector<8x32xf32> -> vector<8x32xf32>
    %31 = arith.truncf %26 : vector<16x32xf32> to vector<16x32xbf16>
    %cst_11 = arith.constant dense<0.000000e+00> : vector<8x32xf32>
    %32 = tpu.matmul %28, %31, %cst_11 {dimension_numbers = #tpu.dot_dimension_numbers<[1], [0], [0], [1], [0, 0, 1, 1], [], []>} : vector<8x16xbf16>, vector<16x32xbf16>, vector<8x32xf32> -> vector<8x32xf32>
    %33 = arith.truncf %24 : vector<16x32xf32> to vector<16x32xbf16>
    %34 = arith.truncf %30 : vector<8x32xf32> to vector<8x32xbf16>
    %cst_12 = arith.constant dense<0.000000e+00> : vector<16x8xf32>
    %35 = tpu.matmul %33, %34, %cst_12 {dimension_numbers = #tpu.dot_dimension_numbers<[1], [1], [0], [0], [0, 0, 1, 0], [], []>} : vector<16x32xbf16>, vector<8x32xbf16>, vector<16x8xf32> -> vector<16x8xf32>
    %cst_13 = arith.constant 0.188982233 : f32
    %36 = vector.broadcast %cst_13 : f32 to vector<16x8xf32>
    %37 = arith.mulf %35, %36 : vector<16x8xf32>
    %cst_14 = arith.constant dense<0xFF800000> : vector<16xf32>
    %38 = vector.multi_reduction <maximumf>, %37, %cst_14 [1] : vector<16x8xf32> to vector<16xf32>
    %39 = vector.shape_cast %38 : vector<16xf32> to vector<16x1xf32>
    %40 = vector.broadcast %39 : vector<16x1xf32> to vector<16x8xf32>
    %41 = arith.subf %37, %40 : vector<16x8xf32>
    %42 = math.exp %41 : vector<16x8xf32>
    %cst_15 = arith.constant dense<0.000000e+00> : vector<16xf32>
    %43 = vector.multi_reduction <add>, %42, %cst_15 [1] : vector<16x8xf32> to vector<16xf32>
    %44 = vector.shape_cast %43 : vector<16xf32> to vector<16x1xf32>
    %45 = vector.broadcast %44 : vector<16x1xf32> to vector<16x8xf32>
    %46 = arith.divf %42, %45 : vector<16x8xf32>
    %47 = arith.truncf %46 : vector<16x8xf32> to vector<16x8xbf16>
    %48 = arith.truncf %32 : vector<8x32xf32> to vector<8x32xbf16>
    %cst_16 = arith.constant dense<0.000000e+00> : vector<16x32xf32>
    %49 = tpu.matmul %47, %48, %cst_16 {dimension_numbers = #tpu.dot_dimension_numbers<[1], [0], [0], [1], [0, 0, 1, 1], [], []>} : vector<16x8xbf16>, vector<8x32xbf16>, vector<16x32xf32> -> vector<16x32xf32>
    %c0_17 = arith.constant 0 : index
    %c224 = arith.constant 224 : index
    %50 = vector.load %arg3[%c0_17, %c224] : memref<32x768xbf16, #tpu.memory_space<vmem>>, vector<32x32xbf16>
    %51 = arith.truncf %49 : vector<16x32xf32> to vector<16x32xbf16>
    %cst_18 = arith.constant dense<0.000000e+00> : vector<16x32xf32>
    %52 = tpu.matmul %51, %50, %cst_18 {dimension_numbers = #tpu.dot_dimension_numbers<[1], [0], [0], [1], [0, 0, 1, 1], [], []>} : vector<16x32xbf16>, vector<32x32xbf16>, vector<16x32xf32> -> vector<16x32xf32>
    %53 = arith.addf %20, %52 : vector<16x32xf32>
    %c0_19 = arith.constant 0 : index
    %c288 = arith.constant 288 : index
    %54 = vector.load %arg3[%c0_19, %c288] : memref<32x768xbf16, #tpu.memory_space<vmem>>, vector<32x32xbf16>
    %55 = arith.truncf %53 : vector<16x32xf32> to vector<16x32xbf16>
    %cst_20 = arith.constant dense<0.000000e+00> : vector<16x32xf32>
    %56 = tpu.matmul %55, %54, %cst_20 {dimension_numbers = #tpu.dot_dimension_numbers<[1], [0], [0], [1], [0, 0, 1, 1], [], []>} : vector<16x32xbf16>, vector<32x32xbf16>, vector<16x32xf32> -> vector<16x32xf32>
    %c0_21 = arith.constant 0 : index
    %c32_22 = arith.constant 32 : index
    %57 = vector.load %arg4[%c0_21, %c32_22] : memref<1x384xf32, #tpu.memory_space<vmem>>, vector<1x32xf32>
    %58 = vector.broadcast %57 : vector<1x32xf32> to vector<16x32xf32>
    %59 = arith.addf %56, %58 : vector<16x32xf32>
    %60 = arith.mulf %59, %59 : vector<16x32xf32>
    %61 = arith.mulf %59, %60 : vector<16x32xf32>
    %cst_23 = arith.constant 4.471500e-02 : f32
    %62 = vector.broadcast %cst_23 : f32 to vector<16x32xf32>
    %63 = arith.mulf %62, %61 : vector<16x32xf32>
    %64 = arith.addf %59, %63 : vector<16x32xf32>
    %cst_24 = arith.constant 0.797884583 : f32
    %65 = vector.broadcast %cst_24 : f32 to vector<16x32xf32>
    %66 = arith.mulf %65, %64 : vector<16x32xf32>
    %67 = math.tanh %66 : vector<16x32xf32>
    %cst_25 = arith.constant 1.000000e+00 : f32
    %68 = vector.broadcast %cst_25 : f32 to vector<16x32xf32>
    %69 = arith.addf %68, %67 : vector<16x32xf32>
    %cst_26 = arith.constant 5.000000e-01 : f32
    %70 = vector.broadcast %cst_26 : f32 to vector<16x32xf32>
    %71 = arith.mulf %70, %69 : vector<16x32xf32>
    %72 = arith.mulf %59, %71 : vector<16x32xf32>
    %c0_27 = arith.constant 0 : index
    %c352 = arith.constant 352 : index
    %73 = vector.load %arg3[%c0_27, %c352] : memref<32x768xbf16, #tpu.memory_space<vmem>>, vector<32x32xbf16>
    %74 = arith.truncf %72 : vector<16x32xf32> to vector<16x32xbf16>
    %cst_28 = arith.constant dense<0.000000e+00> : vector<16x32xf32>
    %75 = tpu.matmul %74, %73, %cst_28 {dimension_numbers = #tpu.dot_dimension_numbers<[1], [0], [0], [1], [0, 0, 1, 1], [], []>} : vector<16x32xbf16>, vector<32x32xbf16>, vector<16x32xf32> -> vector<16x32xf32>
    %76 = arith.addf %53, %75 : vector<16x32xf32>
    %c0_29 = arith.constant 0 : index
    %c96 = arith.constant 96 : index
    %77 = vector.load %arg4[%c0_29, %c96] : memref<1x384xf32, #tpu.memory_space<vmem>>, vector<1x32xf32>
    %78 = vector.broadcast %77 : vector<1x32xf32> to vector<16x32xf32>
    %79 = arith.addf %76, %78 : vector<16x32xf32>
    %cst_30 = arith.constant 0.000000e+00 : f32
    %80 = vector.broadcast %cst_30 : f32 to vector<16x32xf32>
    %81 = arith.cmpf oge, %79, %80 : vector<16x32xf32>
    %cst_31 = arith.constant 0.00999999977 : f32
    %82 = vector.broadcast %cst_31 : f32 to vector<16x32xf32>
    %83 = arith.mulf %82, %79 : vector<16x32xf32>
    %84 = arith.select %81, %79, %83 : vector<16x32xi1>, vector<16x32xf32>
    %c0_32 = arith.constant 0 : index
    %c416 = arith.constant 416 : index
    %85 = vector.load %arg3[%c0_32, %c416] : memref<32x768xbf16, #tpu.memory_space<vmem>>, vector<32x64xbf16>
    %86 = arith.truncf %84 : vector<16x32xf32> to vector<16x32xbf16>
    %cst_33 = arith.constant dense<0.000000e+00> : vector<16x64xf32>
    %87 = tpu.matmul %86, %85, %cst_33 {dimension_numbers = #tpu.dot_dimension_numbers<[1], [0], [0], [1], [0, 0, 1, 1], [], []>} : vector<16x32xbf16>, vector<32x64xbf16>, vector<16x64xf32> -> vector<16x64xf32>
    %c0_34 = arith.constant 0 : index
    %c160 = arith.constant 160 : index
    %88 = vector.load %arg4[%c0_34, %c160] : memref<1x384xf32, #tpu.memory_space<vmem>>, vector<1x64xf32>
    %89 = vector.broadcast %88 : vector<1x64xf32> to vector<16x64xf32>
    %90 = arith.addf %87, %89 : vector<16x64xf32>
    %91 = vector.extract_strided_slice %90 {offsets = [0, 0], sizes = [16, 32], strides = [1, 1]} : vector<16x64xf32> to vector<16x32xf32>
    %cst_35 = arith.constant 0.000000e+00 : f32
    %92 = vector.broadcast %cst_35 : f32 to vector<16x32xf32>
    %93 = arith.cmpf oge, %91, %92 : vector<16x32xf32>
    %cst_36 = arith.constant 0.00999999977 : f32
    %94 = vector.broadcast %cst_36 : f32 to vector<16x32xf32>
    %95 = arith.mulf %94, %91 : vector<16x32xf32>
    %96 = arith.select %93, %91, %95 : vector<16x32xi1>, vector<16x32xf32>
    %c0_37 = arith.constant 0 : index
    %c544 = arith.constant 544 : index
    %97 = vector.load %arg3[%c0_37, %c544] : memref<32x768xbf16, #tpu.memory_space<vmem>>, vector<32x32xbf16>
    %98 = arith.truncf %96 : vector<16x32xf32> to vector<16x32xbf16>
    %cst_38 = arith.constant dense<0.000000e+00> : vector<16x32xf32>
    %99 = tpu.matmul %98, %97, %cst_38 {dimension_numbers = #tpu.dot_dimension_numbers<[1], [0], [0], [1], [0, 0, 1, 1], [], []>} : vector<16x32xbf16>, vector<32x32xbf16>, vector<16x32xf32> -> vector<16x32xf32>
    %c0_39 = arith.constant 0 : index
    %c288_40 = arith.constant 288 : index
    %100 = vector.load %arg4[%c0_39, %c288_40] : memref<1x384xf32, #tpu.memory_space<vmem>>, vector<1x32xf32>
    %101 = vector.broadcast %100 : vector<1x32xf32> to vector<16x32xf32>
    %102 = arith.addf %99, %101 : vector<16x32xf32>
    %cst_41 = arith.constant 9.99999974E-6 : f32
    %103 = vector.broadcast %cst_41 : f32 to vector<16x32xf32>
    %104 = arith.maximumf %102, %103 : vector<16x32xf32>
    %105 = arith.minimumf %104, %4 : vector<16x32xf32>
    %106 = vector.extract_strided_slice %90 {offsets = [0, 32], sizes = [16, 32], strides = [1, 1]} : vector<16x64xf32> to vector<16x32xf32>
    %cst_42 = arith.constant 9.99999974E-6 : f32
    %107 = vector.broadcast %cst_42 : f32 to vector<16x32xf32>
    %108 = arith.maximumf %106, %107 : vector<16x32xf32>
    %109 = vector.extract_strided_slice %23 {offsets = [0, 96], sizes = [16, 32], strides = [1, 1]} : vector<16x192xf32> to vector<16x32xf32>
    %110 = vector.extract_strided_slice %23 {offsets = [0, 128], sizes = [16, 32], strides = [1, 1]} : vector<16x192xf32> to vector<16x32xf32>
    %111 = vector.extract_strided_slice %23 {offsets = [0, 160], sizes = [16, 32], strides = [1, 1]} : vector<16x192xf32> to vector<16x32xf32>
    %c0_43 = arith.constant 0 : index
    %c640 = arith.constant 640 : index
    %112 = vector.load %arg3[%c0_43, %c640] : memref<32x768xbf16, #tpu.memory_space<vmem>>, vector<8x16xbf16>
    %c0_44 = arith.constant 0 : index
    %c656 = arith.constant 656 : index
    %113 = vector.load %arg3[%c0_44, %c656] : memref<32x768xbf16, #tpu.memory_space<vmem>>, vector<8x16xbf16>
    %114 = arith.truncf %110 : vector<16x32xf32> to vector<16x32xbf16>
    %cst_45 = arith.constant dense<0.000000e+00> : vector<8x32xf32>
    %115 = tpu.matmul %112, %114, %cst_45 {dimension_numbers = #tpu.dot_dimension_numbers<[1], [0], [0], [1], [0, 0, 1, 1], [], []>} : vector<8x16xbf16>, vector<16x32xbf16>, vector<8x32xf32> -> vector<8x32xf32>
    %116 = arith.truncf %111 : vector<16x32xf32> to vector<16x32xbf16>
    %cst_46 = arith.constant dense<0.000000e+00> : vector<8x32xf32>
    %117 = tpu.matmul %113, %116, %cst_46 {dimension_numbers = #tpu.dot_dimension_numbers<[1], [0], [0], [1], [0, 0, 1, 1], [], []>} : vector<8x16xbf16>, vector<16x32xbf16>, vector<8x32xf32> -> vector<8x32xf32>
    %118 = arith.truncf %109 : vector<16x32xf32> to vector<16x32xbf16>
    %119 = arith.truncf %115 : vector<8x32xf32> to vector<8x32xbf16>
    %cst_47 = arith.constant dense<0.000000e+00> : vector<16x8xf32>
    %120 = tpu.matmul %118, %119, %cst_47 {dimension_numbers = #tpu.dot_dimension_numbers<[1], [1], [0], [0], [0, 0, 1, 0], [], []>} : vector<16x32xbf16>, vector<8x32xbf16>, vector<16x8xf32> -> vector<16x8xf32>
    %cst_48 = arith.constant 0.188982233 : f32
    %121 = vector.broadcast %cst_48 : f32 to vector<16x8xf32>
    %122 = arith.mulf %120, %121 : vector<16x8xf32>
    %cst_49 = arith.constant dense<0xFF800000> : vector<16xf32>
    %123 = vector.multi_reduction <maximumf>, %122, %cst_49 [1] : vector<16x8xf32> to vector<16xf32>
    %124 = vector.shape_cast %123 : vector<16xf32> to vector<16x1xf32>
    %125 = vector.broadcast %124 : vector<16x1xf32> to vector<16x8xf32>
    %126 = arith.subf %122, %125 : vector<16x8xf32>
    %127 = math.exp %126 : vector<16x8xf32>
    %cst_50 = arith.constant dense<0.000000e+00> : vector<16xf32>
    %128 = vector.multi_reduction <add>, %127, %cst_50 [1] : vector<16x8xf32> to vector<16xf32>
    %129 = vector.shape_cast %128 : vector<16xf32> to vector<16x1xf32>
    %130 = vector.broadcast %129 : vector<16x1xf32> to vector<16x8xf32>
    %131 = arith.divf %127, %130 : vector<16x8xf32>
    %132 = arith.truncf %131 : vector<16x8xf32> to vector<16x8xbf16>
    %133 = arith.truncf %117 : vector<8x32xf32> to vector<8x32xbf16>
    %cst_51 = arith.constant dense<0.000000e+00> : vector<16x32xf32>
    %134 = tpu.matmul %132, %133, %cst_51 {dimension_numbers = #tpu.dot_dimension_numbers<[1], [0], [0], [1], [0, 0, 1, 1], [], []>} : vector<16x8xbf16>, vector<8x32xbf16>, vector<16x32xf32> -> vector<16x32xf32>
    %c0_52 = arith.constant 0 : index
    %c256 = arith.constant 256 : index
    %135 = vector.load %arg3[%c0_52, %c256] : memref<32x768xbf16, #tpu.memory_space<vmem>>, vector<32x32xbf16>
    %136 = arith.truncf %134 : vector<16x32xf32> to vector<16x32xbf16>
    %cst_53 = arith.constant dense<0.000000e+00> : vector<16x32xf32>
    %137 = tpu.matmul %136, %135, %cst_53 {dimension_numbers = #tpu.dot_dimension_numbers<[1], [0], [0], [1], [0, 0, 1, 1], [], []>} : vector<16x32xbf16>, vector<32x32xbf16>, vector<16x32xf32> -> vector<16x32xf32>
    %138 = arith.addf %20, %137 : vector<16x32xf32>
    %c0_54 = arith.constant 0 : index
    %c320 = arith.constant 320 : index
    %139 = vector.load %arg3[%c0_54, %c320] : memref<32x768xbf16, #tpu.memory_space<vmem>>, vector<32x32xbf16>
    %140 = arith.truncf %138 : vector<16x32xf32> to vector<16x32xbf16>
    %cst_55 = arith.constant dense<0.000000e+00> : vector<16x32xf32>
    %141 = tpu.matmul %140, %139, %cst_55 {dimension_numbers = #tpu.dot_dimension_numbers<[1], [0], [0], [1], [0, 0, 1, 1], [], []>} : vector<16x32xbf16>, vector<32x32xbf16>, vector<16x32xf32> -> vector<16x32xf32>
    %c0_56 = arith.constant 0 : index
    %c64 = arith.constant 64 : index
    %142 = vector.load %arg4[%c0_56, %c64] : memref<1x384xf32, #tpu.memory_space<vmem>>, vector<1x32xf32>
    %143 = vector.broadcast %142 : vector<1x32xf32> to vector<16x32xf32>
    %144 = arith.addf %141, %143 : vector<16x32xf32>
    %145 = arith.mulf %144, %144 : vector<16x32xf32>
    %146 = arith.mulf %144, %145 : vector<16x32xf32>
    %cst_57 = arith.constant 4.471500e-02 : f32
    %147 = vector.broadcast %cst_57 : f32 to vector<16x32xf32>
    %148 = arith.mulf %147, %146 : vector<16x32xf32>
    %149 = arith.addf %144, %148 : vector<16x32xf32>
    %cst_58 = arith.constant 0.797884583 : f32
    %150 = vector.broadcast %cst_58 : f32 to vector<16x32xf32>
    %151 = arith.mulf %150, %149 : vector<16x32xf32>
    %152 = math.tanh %151 : vector<16x32xf32>
    %cst_59 = arith.constant 1.000000e+00 : f32
    %153 = vector.broadcast %cst_59 : f32 to vector<16x32xf32>
    %154 = arith.addf %153, %152 : vector<16x32xf32>
    %cst_60 = arith.constant 5.000000e-01 : f32
    %155 = vector.broadcast %cst_60 : f32 to vector<16x32xf32>
    %156 = arith.mulf %155, %154 : vector<16x32xf32>
    %157 = arith.mulf %144, %156 : vector<16x32xf32>
    %c0_61 = arith.constant 0 : index
    %c384 = arith.constant 384 : index
    %158 = vector.load %arg3[%c0_61, %c384] : memref<32x768xbf16, #tpu.memory_space<vmem>>, vector<32x32xbf16>
    %159 = arith.truncf %157 : vector<16x32xf32> to vector<16x32xbf16>
    %cst_62 = arith.constant dense<0.000000e+00> : vector<16x32xf32>
    %160 = tpu.matmul %159, %158, %cst_62 {dimension_numbers = #tpu.dot_dimension_numbers<[1], [0], [0], [1], [0, 0, 1, 1], [], []>} : vector<16x32xbf16>, vector<32x32xbf16>, vector<16x32xf32> -> vector<16x32xf32>
    %161 = arith.addf %138, %160 : vector<16x32xf32>
    %c0_63 = arith.constant 0 : index
    %c128 = arith.constant 128 : index
    %162 = vector.load %arg4[%c0_63, %c128] : memref<1x384xf32, #tpu.memory_space<vmem>>, vector<1x32xf32>
    %163 = vector.broadcast %162 : vector<1x32xf32> to vector<16x32xf32>
    %164 = arith.addf %161, %163 : vector<16x32xf32>
    %cst_64 = arith.constant 0.000000e+00 : f32
    %165 = vector.broadcast %cst_64 : f32 to vector<16x32xf32>
    %166 = arith.cmpf oge, %164, %165 : vector<16x32xf32>
    %cst_65 = arith.constant 0.00999999977 : f32
    %167 = vector.broadcast %cst_65 : f32 to vector<16x32xf32>
    %168 = arith.mulf %167, %164 : vector<16x32xf32>
    %169 = arith.select %166, %164, %168 : vector<16x32xi1>, vector<16x32xf32>
    %c0_66 = arith.constant 0 : index
    %c480 = arith.constant 480 : index
    %170 = vector.load %arg3[%c0_66, %c480] : memref<32x768xbf16, #tpu.memory_space<vmem>>, vector<32x64xbf16>
    %171 = arith.truncf %169 : vector<16x32xf32> to vector<16x32xbf16>
    %cst_67 = arith.constant dense<0.000000e+00> : vector<16x64xf32>
    %172 = tpu.matmul %171, %170, %cst_67 {dimension_numbers = #tpu.dot_dimension_numbers<[1], [0], [0], [1], [0, 0, 1, 1], [], []>} : vector<16x32xbf16>, vector<32x64xbf16>, vector<16x64xf32> -> vector<16x64xf32>
    %c0_68 = arith.constant 0 : index
    %c224_69 = arith.constant 224 : index
    %173 = vector.load %arg4[%c0_68, %c224_69] : memref<1x384xf32, #tpu.memory_space<vmem>>, vector<1x64xf32>
    %174 = vector.broadcast %173 : vector<1x64xf32> to vector<16x64xf32>
    %175 = arith.addf %172, %174 : vector<16x64xf32>
    %176 = vector.extract_strided_slice %175 {offsets = [0, 0], sizes = [16, 32], strides = [1, 1]} : vector<16x64xf32> to vector<16x32xf32>
    %cst_70 = arith.constant 0.000000e+00 : f32
    %177 = vector.broadcast %cst_70 : f32 to vector<16x32xf32>
    %178 = arith.cmpf oge, %176, %177 : vector<16x32xf32>
    %cst_71 = arith.constant 0.00999999977 : f32
    %179 = vector.broadcast %cst_71 : f32 to vector<16x32xf32>
    %180 = arith.mulf %179, %176 : vector<16x32xf32>
    %181 = arith.select %178, %176, %180 : vector<16x32xi1>, vector<16x32xf32>
    %c0_72 = arith.constant 0 : index
    %c576 = arith.constant 576 : index
    %182 = vector.load %arg3[%c0_72, %c576] : memref<32x768xbf16, #tpu.memory_space<vmem>>, vector<32x32xbf16>
    %183 = arith.truncf %181 : vector<16x32xf32> to vector<16x32xbf16>
    %cst_73 = arith.constant dense<0.000000e+00> : vector<16x32xf32>
    %184 = tpu.matmul %183, %182, %cst_73 {dimension_numbers = #tpu.dot_dimension_numbers<[1], [0], [0], [1], [0, 0, 1, 1], [], []>} : vector<16x32xbf16>, vector<32x32xbf16>, vector<16x32xf32> -> vector<16x32xf32>
    %c0_74 = arith.constant 0 : index
    %c320_75 = arith.constant 320 : index
    %185 = vector.load %arg4[%c0_74, %c320_75] : memref<1x384xf32, #tpu.memory_space<vmem>>, vector<1x32xf32>
    %186 = vector.broadcast %185 : vector<1x32xf32> to vector<16x32xf32>
    %187 = arith.addf %184, %186 : vector<16x32xf32>
    %cst_76 = arith.constant 9.99999974E-6 : f32
    %188 = vector.broadcast %cst_76 : f32 to vector<16x32xf32>
    %189 = arith.maximumf %187, %188 : vector<16x32xf32>
    %190 = arith.minimumf %189, %4 : vector<16x32xf32>
    %191 = vector.extract_strided_slice %175 {offsets = [0, 32], sizes = [16, 32], strides = [1, 1]} : vector<16x64xf32> to vector<16x32xf32>
    %cst_77 = arith.constant 9.99999974E-6 : f32
    %192 = vector.broadcast %cst_77 : f32 to vector<16x32xf32>
    %193 = arith.maximumf %191, %192 : vector<16x32xf32>
    %194 = tpu.concatenate %105, %108, %190, %193 in 1 : vector<16x32xf32>, vector<16x32xf32>, vector<16x32xf32>, vector<16x32xf32> -> vector<16x128xf32>
    %c0_78 = arith.constant 0 : index
    %c0_79 = arith.constant 0 : index
    %c0_80 = arith.constant 0 : index
    %195 = vector.load %arg5[%c0_78, %c0_79, %c0_80] : memref<1x16x128xf32, #tpu.memory_space<vmem>>, vector<1x16x128xf32>
    %196 = vector.shape_cast %195 : vector<1x16x128xf32> to vector<16x128xf32>
    %197 = vector.shape_cast %194 : vector<16x128xf32> to vector<1x16x128xf32>
    tpu.vector_store %arg5[%c0_78, %c0_79, %c0_80], %197 {strides = array<i32>} : memref<1x16x128xf32, #tpu.memory_space<vmem>>, vector<1x16x128xf32>,
    return
  }
  func.func @transform_0(%arg0: i32, %arg1: memref<1xi32, #tpu.memory_space<smem>>) -> (i32, i32, i32) {
    %c0_i32 = arith.constant 0 : i32
    %c0_i32_0 = arith.constant 0 : i32
    %c0_i32_1 = arith.constant 0 : i32
    return %arg0, %c0_i32, %c0_i32_0 : i32, i32, i32
  }
  func.func @transform_1(%arg0: i32, %arg1: memref<1xi32, #tpu.memory_space<smem>>) -> (i32, i32) {
    %c0_i32 = arith.constant 0 : i32
    %c0_i32_0 = arith.constant 0 : i32
    %c0_i32_1 = arith.constant 0 : i32
    return %c0_i32, %c0_i32_0 : i32, i32
  }
  func.func @transform_2(%arg0: i32, %arg1: memref<1xi32, #tpu.memory_space<smem>>) -> (i32, i32) {
    %c0_i32 = arith.constant 0 : i32
    %c0_i32_0 = arith.constant 0 : i32
    %c0_i32_1 = arith.constant 0 : i32
    return %c0_i32, %c0_i32_0 : i32, i32
  }
  func.func @transform_3(%arg0: i32, %arg1: memref<1xi32, #tpu.memory_space<smem>>) -> (i32, i32, i32) {
    %c0_i32 = arith.constant 0 : i32
    %c0_i32_0 = arith.constant 0 : i32
    %c0_i32_1 = arith.constant 0 : i32
    return %arg0, %c0_i32, %c0_i32_0 : i32, i32, i32
  }
}

</mosaic_0001>

<llo_original>
// kernel: _forward_batched_jit.1
$region0: #{_forward_batched_jit.1}
  #allocation0 [shape = 'u32[]', space=smem, size = 0x4, offset = 0x4, fixed_abs, tag = 'smem constant byte address 0x4 - core index']
  #allocation1 [shape = 'u32[144,128]{1,0:T(1,128)}', space=vmem, size = 0x12000, scoped, tag = 'internal scratch']
  #allocation2 [shape = 's32[1]{0}', space=sflag, size = 0x4, scoped, tag = 'scoped memory for _forward_batched_jit.1']
  #allocation3 [shape = 's32[1]{0:T(128)S(6)}', space=smem, size = 0x200, scoped, tag = 'prefetched SMEM operand 0']
  %s0 = inlined_call_operand.<no memory space> [shape: s32[1], index: 0, kind: input, shape index: {}]
  %s1 = inlined_call_operand.vmem [shape: f32[1,16,64], index: 1, kind: input, shape index: {}]
  %s2 = inlined_call_operand.vmem [shape: bf16[32,768], index: 2, kind: input, shape index: {}]
  %s3 = inlined_call_operand.vmem [shape: f32[1,384], index: 3, kind: input, shape index: {}]
  %s4 = inlined_call_operand.vmem [shape: f32[1,16,128], index: 4, kind: output, shape index: {}]
  %s5 = sld [smem:[#allocation0]]
  $region22: #{_forward_batched_jit.1} parent=0
    _
  %s7 = ssub.s32 1, %s5
  %s8 = scalar_select 0, %s7, %s5
  %9 = sst [smem:[#allocation3]] %s0
  // Predicated region
  $region2: #{_forward_batched_jit.1} parent=0 // pred_check
    _
  $region3: #{_forward_batched_jit.1} parent=0 // pred_check_branch
    %11 = sbr.rel (0) target = $region5
  $region4: #{_forward_batched_jit.1} parent=0 // pred_region
    _
  $region5: #{_forward_batched_jit.1} parent=0 // pred_fallthru
    _
  // Predicated region
  $region6: #{_forward_batched_jit.1} parent=0 // pred_check
    _
  $region7: #{_forward_batched_jit.1} parent=0 // pred_check_branch
    %13 = sbr.rel (0) target = $region9
  $region8: #{_forward_batched_jit.1} parent=0 // pred_region
    _
  $region9: #{_forward_batched_jit.1} parent=0 // pred_fallthru
    _
  // Predicated region
  $region10: #{_forward_batched_jit.1} parent=0 // pred_check
    _
  $region11: #{_forward_batched_jit.1} parent=0 // pred_check_branch
    %15 = sbr.rel (0) target = $region13
  $region12: #{_forward_batched_jit.1} parent=0 // pred_region
    _
  $region13: #{_forward_batched_jit.1} parent=0 // pred_fallthru
    _
  %s17 = sld [smem:[#allocation3]]
  %v18 = vld [vmem:[%s1] sm:$0xff]
  %v19 = vld [vmem:[%s1 + $0x8] sm:$0xff]
  %v20 = vadd.f32 %v18, 1.0
  %v21 = vlog2.pop %v20
  %v22 = vmul.f32 %v21, 0.6931472
  %v23 = vmul.f32 -0.5, %v18
  %v24 = vadd.f32 %v23, 1.0
  %v25 = vmul.f32 %v24, %v18
  %v26 = vand.u32 2147483647, %v18
  %vm27 = vcmp.lt.f32.partialorder %v26, 0.0004427343
  %v28 = vsel %vm27, %v25, %v22
  %v29 = vadd.f32 %v19, 1.0
  %v30 = vlog2.pop %v29
  %v31 = vmul.f32 %v30, 0.6931472
  %v32 = vmul.f32 -0.5, %v19
  %v33 = vadd.f32 %v32, 1.0
  %v34 = vmul.f32 %v33, %v19
  %v35 = vand.u32 2147483647, %v19
  %vm36 = vcmp.lt.f32.partialorder %v35, 0.0004427343
  %v37 = vsel %vm36, %v34, %v31
  %v38 = vld [vmem:[%s2] sm:$0xf]
  %v39 = vld [vmem:[%s2 + $0x18] sm:$0xf]
  %v40 = vld [vmem:[%s2 + $0x30] sm:$0xf]
  %v41 = vld [vmem:[%s2 + $0x48] sm:$0xf]
  %v42 = vpack.c.bf16 %v37, %v28
  %v43 = vld [vmem:[%s3] sm:$0x1]
  %v45 = vlaneseq
  %v46 = vshrl.u32 %v45, 7
  %v47 = vsub.s32 0, %v46
  %v48 = vrot.slane %v43, %v47
  %v54 = vunpack.c.l.b16 %v38
  %v55 = vunpack.c.l.b16 %v39
  %v56 = vunpack.c.l.b16 %v40
  %v57 = vunpack.c.l.b16 %v41
  %v58 = vpack.c.b16 %v55, %v54
  %v59 = vpack.c.b16 %v57, %v56
  %vm62 = vcmask 261120
  %v64 = vsel %vm62, %v42, 0
  %66 = vmatprep.subr.bf16.mxu0 0
  %67 = vmatpush1.bf16.msra.mxu0 %v58
  %68 = vmatprep.subr.bf16.mxu0 0
  %69 = vmatpush1.bf16.msra.mxu0 %v59
  %70 = vmatprep.subr.bf16.mxu0 0
  %71 = vmatpush1.bf16.msra.mxu0 0
  %72 = vmatprep.subr.bf16.mxu0 0
  %73 = vmatpush1.bf16.msra.mxu0 0
  %74 = vmatprep.subr.bf16.mxu0 0
  %75 = vmatpush1.bf16.msra.mxu0 0
  %76 = vmatprep.subr.bf16.mxu0 0
  %77 = vmatpush1.bf16.msra.mxu0 0
  %78 = vmatprep.subr.bf16.mxu0 0
  %79 = vmatpush1.bf16.msra.mxu0 0
  %80 = vmatprep.subr.bf16.mxu0 0
  %81 = vmatpush1.bf16.msra.mxu0 0
  %82 = vmatprep.subr.bf16.mxu0 0
  %83 = vmatpush1.bf16.msra.mxu0 0
  %84 = vmatprep.subr.bf16.mxu0 0
  %85 = vmatpush1.bf16.msra.mxu0 0
  %86 = vmatprep.subr.bf16.mxu0 0
  %87 = vmatpush1.bf16.msra.mxu0 0
  %88 = vmatprep.subr.bf16.mxu0 0
  %89 = vmatpush1.bf16.msra.mxu0 0
  %90 = vmatprep.subr.bf16.mxu0 0
  %91 = vmatpush1.bf16.msra.mxu0 0
  %92 = vmatprep.subr.bf16.mxu0 0
  %93 = vmatpush1.bf16.msra.mxu0 0
  %94 = vmatprep.subr.bf16.mxu0 0
  %95 = vmatpush1.bf16.msra.mxu0 0
  %96 = vmatprep.subr.bf16.mxu0 0
  %97 = vmatpush1.bf16.msra.mxu0 0
  %98 = vmatprep.mubr.bf16.mxu0 0
  %99 = vmatmul.mubr.bf16.gmra.mrb[0].mxu0 %v64
  %v100 = vpop.f32.mrb[0].mxu0
  %v101 = vadd.f32 %v48, %v100
  %v102 = vpop.f32.mrb[0].mxu0
  %v103 = vpop.f32.mrb[0].mxu0
  %v104 = vadd.f32 %v48, %v103
  %v105 = vpop.f32.mrb[0].mxu0
  %106 = vdwg.mxu0
  %v107 = vlaneseq
  %v108 = vshrl.u32 %v107, 7
  %v109 = vadd.s32 %v108, 8
  %v110 = vstv %s17
  %vm111 = vcmp.lt.s32.totalorder %v108, %v110
  %vm112 = vcmp.lt.s32.totalorder %v109, %v110
  %v113 = vsel %vm111, 1, 0
  %v114 = vsel %vm112, 1, 0
  %v115 = vcvt.s32.f32 %v113
  %v116 = vcvt.s32.f32 %v114
  %119 = vrot.lane.b32.xlu0 %v18, 96
  %v120 = vpop.permute.xlu0 %119
  %121 = vrot.lane.b32.xlu0 %v19, 96
  %v122 = vpop.permute.xlu0 %121
  %v125 = vadd.f32 %v101, %v120
  %v126 = vadd.f32 %v104, %v122
  %v127 = vmul.f32 %v125, %v115
  %v128 = vmul.f32 %v126, %v116
  %v129 = vld [vmem:[%s2] sm:$0xff]
  %v130 = vld [vmem:[%s2 + $0x18] sm:$0xff]
  %v131 = vld [vmem:[%s2 + $0x30] sm:$0xff]
  %v132 = vld [vmem:[%s2 + $0x48] sm:$0xff]
  %v133 = vpack.c.bf16 %v128, %v127
  %v138 = vunpack.c.l.b16 %v129
  %v139 = vunpack.c.h.b16 %v129
  %v140 = vunpack.c.l.b16 %v130
  %v141 = vunpack.c.h.b16 %v130
  %v142 = vunpack.c.l.b16 %v131
  %v143 = vunpack.c.h.b16 %v131
  %v144 = vunpack.c.l.b16 %v132
  %v145 = vunpack.c.h.b16 %v132
  %v146 = vpack.c.b16 %v140, %v138
  %v147 = vpack.c.b16 %v141, %v139
  %v148 = vpack.c.b16 %v144, %v142
  %v149 = vpack.c.b16 %v145, %v143
  %150 = vrot.lane.b32.xlu0 %v146, 96
  %v151 = vpop.permute.xlu0 %150
  %152 = vrot.lane.b32.xlu0 %v147, 96
  %v153 = vpop.permute.xlu0 %152
  %154 = vrot.lane.b32.xlu0 %v148, 96
  %v155 = vpop.permute.xlu0 %154
  %156 = vrot.lane.b32.xlu0 %v149, 96
  %v157 = vpop.permute.xlu0 %156
  %vm158 = vcmask 785408
  %v159 = vsel %vm158, %v151, %v153
  %v160 = vsel %vm158, %v155, %v157
  %v166 = vsel %vm62, %v133, 0
  %168 = vmatprep.subr.bf16.mxu0 %v153
  %169 = vmatpush1.bf16.msra.mxu0 %v159
  %170 = vmatprep.subr.bf16.mxu0 %v157
  %171 = vmatpush1.bf16.msra.mxu0 %v160
  %172 = vmatprep.subr.bf16.mxu0 0
  %173 = vmatpush1.bf16.msra.mxu0 0
  %174 = vmatprep.subr.bf16.mxu0 0
  %175 = vmatpush1.bf16.msra.mxu0 0
  %176 = vmatprep.subr.bf16.mxu0 0
  %177 = vmatpush1.bf16.msra.mxu0 0
  %178 = vmatprep.subr.bf16.mxu0 0
  %179 = vmatpush1.bf16.msra.mxu0 0
  %180 = vmatprep.subr.bf16.mxu0 0
  %181 = vmatpush1.bf16.msra.mxu0 0
  %182 = vmatprep.subr.bf16.mxu0 0
  %183 = vmatpush1.bf16.msra.mxu0 0
  %184 = vmatprep.subr.bf16.mxu0 0
  %185 = vmatpush1.bf16.msra.mxu0 0
  %186 = vmatprep.subr.bf16.mxu0 0
  %187 = vmatpush1.bf16.msra.mxu0 0
  %188 = vmatprep.subr.bf16.mxu0 0
  %189 = vmatpush1.bf16.msra.mxu0 0
  %190 = vmatprep.subr.bf16.mxu0 0
  %191 = vmatpush1.bf16.msra.mxu0 0
  %192 = vmatprep.subr.bf16.mxu0 0
  %193 = vmatpush1.bf16.msra.mxu0 0
  %194 = vmatprep.subr.bf16.mxu0 0
  %195 = vmatpush1.bf16.msra.mxu0 0
  %196 = vmatprep.subr.bf16.mxu0 0
  %197 = vmatpush1.bf16.msra.mxu0 0
  %198 = vmatprep.subr.bf16.mxu0 0
  %199 = vmatpush1.bf16.msra.mxu0 0
  %200 = vmatprep.mubr.bf16.mxu0 0
  %201 = vmatmul.mubr.bf16.gmra.mrb[0].mxu0 %v166
  %v202 = vpop.f32.mrb[0].mxu0
  %v203 = vadd.f32 0.0, %v202
  %v204 = vpop.f32.mrb[0].mxu0
  %v205 = vadd.f32 0.0, %v204
  %v206 = vpop.f32.mrb[0].mxu0
  %v207 = vadd.f32 0.0, %v206
  %v208 = vpop.f32.mrb[0].mxu0
  %v209 = vadd.f32 0.0, %v208
  %210 = vdwg.mxu0
  %v211 = vld [vmem:[%s2 + $0x10] sm:$0xf]
  %v212 = vpack.c.bf16 %v207, %v203
  %v214 = vunpack.c.l.b16 %v211
  %v215 = vpack.c.b16 %v214, %v214
  %216 = vrot.lane.b32.xlu0 %v215, 32
  %v217 = vpop.permute.xlu0 %216
  %219 = vrot.lane.b32.xlu0 %v212, 96
  %v220 = vpop.permute.xlu0 %219
  %vm222 = vcmask 130048
  %v224 = vsel %vm222, %v217, 0
  %226 = vmatprep.subr.bf16.mxu0 0
  %227 = vmatpush1.bf16.msra.mxu0 %v220
  %228 = vmatprep.subr.bf16.mxu0 0
  %229 = vmatpush1.bf16.msra.mxu0 0
  %230 = vmatprep.subr.bf16.mxu0 0
  %231 = vmatpush1.bf16.msra.mxu0 0
  %232 = vmatprep.subr.bf16.mxu0 0
  %233 = vmatpush1.bf16.msra.mxu0 0
  %234 = vmatprep.subr.bf16.mxu0 0
  %235 = vmatpush1.bf16.msra.mxu0 0
  %236 = vmatprep.subr.bf16.mxu0 0
  %237 = vmatpush1.bf16.msra.mxu0 0
  %238 = vmatprep.subr.bf16.mxu0 0
  %239 = vmatpush1.bf16.msra.mxu0 0
  %240 = vmatprep.subr.bf16.mxu0 0
  %241 = vmatpush1.bf16.msra.mxu0 0
  %242 = vmatprep.subr.bf16.mxu0 0
  %243 = vmatpush1.bf16.msra.mxu0 0
  %244 = vmatprep.subr.bf16.mxu0 0
  %245 = vmatpush1.bf16.msra.mxu0 0
  %246 = vmatprep.subr.bf16.mxu0 0
  %247 = vmatpush1.bf16.msra.mxu0 0
  %248 = vmatprep.subr.bf16.mxu0 0
  %249 = vmatpush1.bf16.msra.mxu0 0
  %250 = vmatprep.subr.bf16.mxu0 0
  %251 = vmatpush1.bf16.msra.mxu0 0
  %252 = vmatprep.subr.bf16.mxu0 0
  %253 = vmatpush1.bf16.msra.mxu0 0
  %254 = vmatprep.subr.bf16.mxu0 0
  %255 = vmatpush1.bf16.msra.mxu0 0
  %256 = vmatprep.subr.bf16.mxu0 0
  %257 = vmatpush1.bf16.msra.mxu0 0
  %258 = vmatprep.mubr.bf16.mxu0 0
  %259 = vmatmul.mubr.bf16.gmra.mrb[0].mxu0 %v224
  %v260 = vpop.f32.mrb[0].mxu0
  %v261 = vadd.f32 0.0, %v260
  %v262 = vpop.f32.mrb[0].mxu0
  %v263 = vpop.f32.mrb[0].mxu0
  %v264 = vpop.f32.mrb[0].mxu0
  %265 = vdwg.mxu0
  %266 = vrot.lane.b32.xlu0 %v215, 16
  %v267 = vpop.permute.xlu0 %266
  %268 = vrot.lane.b32.xlu0 %v212, 64
  %v269 = vpop.permute.xlu0 %268
  %v272 = vsel %vm222, %v267, 0
  %274 = vmatprep.subr.bf16.mxu0 0
  %275 = vmatpush1.bf16.msra.mxu0 %v269
  %276 = vmatprep.subr.bf16.mxu0 0
  %277 = vmatpush1.bf16.msra.mxu0 0
  %278 = vmatprep.subr.bf16.mxu0 0
  %279 = vmatpush1.bf16.msra.mxu0 0
  %280 = vmatprep.subr.bf16.mxu0 0
  %281 = vmatpush1.bf16.msra.mxu0 0
  %282 = vmatprep.subr.bf16.mxu0 0
  %283 = vmatpush1.bf16.msra.mxu0 0
  %284 = vmatprep.subr.bf16.mxu0 0
  %285 = vmatpush1.bf16.msra.mxu0 0
  %286 = vmatprep.subr.bf16.mxu0 0
  %287 = vmatpush1.bf16.msra.mxu0 0
  %288 = vmatprep.subr.bf16.mxu0 0
  %289 = vmatpush1.bf16.msra.mxu0 0
  %290 = vmatprep.subr.bf16.mxu0 0
  %291 = vmatpush1.bf16.msra.mxu0 0
  %292 = vmatprep.subr.bf16.mxu0 0
  %293 = vmatpush1.bf16.msra.mxu0 0
  %294 = vmatprep.subr.bf16.mxu0 0
  %295 = vmatpush1.bf16.msra.mxu0 0
  %296 = vmatprep.subr.bf16.mxu0 0
  %297 = vmatpush1.bf16.msra.mxu0 0
  %298 = vmatprep.subr.bf16.mxu0 0
  %299 = vmatpush1.bf16.msra.mxu0 0
  %300 = vmatprep.subr.bf16.mxu0 0
  %301 = vmatpush1.bf16.msra.mxu0 0
  %302 = vmatprep.subr.bf16.mxu0 0
  %303 = vmatpush1.bf16.msra.mxu0 0
  %304 = vmatprep.subr.bf16.mxu0 0
  %305 = vmatpush1.bf16.msra.mxu0 0
  %306 = vmatprep.mubr.bf16.mxu0 0
  %307 = vmatmul.mubr.bf16.gmra.mrb[0].mxu0 %v272
  %v308 = vpop.f32.mrb[0].mxu0
  %v309 = vadd.f32 0.0, %v308
  %v310 = vpop.f32.mrb[0].mxu0
  %v311 = vpop.f32.mrb[0].mxu0
  %v312 = vpop.f32.mrb[0].mxu0
  %313 = vdwg.mxu0
  %v314 = vpack.c.bf16 %v261, %v261
  %v316 = vsel %vm62, %v212, 0
  %v319 = vsel %vm62, %v314, 0
  %321 = vmatprep.subr.bf16.mxu0 0
  %322 = vmatpush1.bf16.xpose.msra.mxu0 %v319
  %323 = vmatprep.subr.bf16.mxu0 0
  %324 = vmatpush1.bf16.xpose.msra.mxu0 0
  %325 = vmatprep.subr.bf16.mxu0 0
  %326 = vmatpush1.bf16.xpose.msra.mxu0 0
  %327 = vmatprep.subr.bf16.mxu0 0
  %328 = vmatpush1.bf16.xpose.msra.mxu0 0
  %329 = vmatprep.subr.bf16.mxu0 0
  %330 = vmatpush1.bf16.xpose.msra.mxu0 0
  %331 = vmatprep.subr.bf16.mxu0 0
  %332 = vmatpush1.bf16.xpose.msra.mxu0 0
  %333 = vmatprep.subr.bf16.mxu0 0
  %334 = vmatpush1.bf16.xpose.msra.mxu0 0
  %335 = vmatprep.subr.bf16.mxu0 0
  %336 = vmatpush1.bf16.xpose.msra.mxu0 0
  %337 = vmatprep.subr.bf16.mxu0 0
  %338 = vmatpush1.bf16.xpose.msra.mxu0 0
  %339 = vmatprep.subr.bf16.mxu0 0
  %340 = vmatpush1.bf16.xpose.msra.mxu0 0
  %341 = vmatprep.subr.bf16.mxu0 0
  %342 = vmatpush1.bf16.xpose.msra.mxu0 0
  %343 = vmatprep.subr.bf16.mxu0 0
  %344 = vmatpush1.bf16.xpose.msra.mxu0 0
  %345 = vmatprep.subr.bf16.mxu0 0
  %346 = vmatpush1.bf16.xpose.msra.mxu0 0
  %347 = vmatprep.subr.bf16.mxu0 0
  %348 = vmatpush1.bf16.xpose.msra.mxu0 0
  %349 = vmatprep.subr.bf16.mxu0 0
  %350 = vmatpush1.bf16.xpose.msra.mxu0 0
  %351 = vmatprep.subr.bf16.mxu0 0
  %352 = vmatpush1.bf16.xpose.msra.mxu0 0
  %353 = vmatprep.mubr.bf16.mxu0 0
  %354 = vmatmul.mubr.bf16.gmra.mrb[0].mxu0 %v316
  %v355 = vpop.f32.mrb[0].mxu0
  %v356 = vadd.f32 0.0, %v355
  %v357 = vpop.f32.mrb[0].mxu0
  %v358 = vpop.f32.mrb[0].mxu0
  %v359 = vadd.f32 0.0, %v358
  %v360 = vpop.f32.mrb[0].mxu0
  %361 = vdwg.mxu0
  %v362 = vmul.f32 %v356, 0.18898223
  %v363 = vmul.f32 %v359, 0.18898223
  %vm364 = vcmask 64512
  %v365 = vsel %vm364, %v362, -inf
  %366 = vmax.xlane.f32.xlu0 %v365
  %v367 = vpop.xlane.xlu0 %366
  %v368 = vsel %vm364, %v363, -inf
  %369 = vmax.xlane.f32.xlu0 %v368
  %v370 = vpop.xlane.xlu0 %369
  %v371 = vsub.f32 %v362, %v367
  %v372 = vsub.f32 %v363, %v370
  %v373 = vmul.f32 %v371, 1.442695
  %v374 = vpow.pop %v373
  %v375 = vmul.f32 %v372, 1.442695
  %v376 = vpow.pop %v375
  %v377 = vsel %vm364, %v374, 0.0
  %378 = vadd.xlane.f32.xlu0 %v377
  %v379 = vpop.xlane.xlu0 %378
  %v380 = vsel %vm364, %v376, 0.0
  %381 = vadd.xlane.f32.xlu0 %v380
  %v382 = vpop.xlane.xlu0 %381
  %v383 = vrcp.pop %v379
  %v384 = vmul.f32 %v374, %v383
  %v385 = vrcp.pop %v382
  %v386 = vmul.f32 %v376, %v385
  %v387 = vpack.c.bf16 %v386, %v384
  %v388 = vpack.c.bf16 %v309, %v309
  %v390 = vsel %vm364, %v387, 0
  %vm392 = vcmask 1043456
  %v394 = vsel %vm392, %v388, 0
  %396 = vmatprep.subr.bf16.mxu0 0
  %397 = vmatpush1.bf16.msra.mxu0 %v394
  %398 = vmatprep.subr.bf16.mxu0 0
  %399 = vmatpush1.bf16.msra.mxu0 0
  %400 = vmatprep.subr.bf16.mxu0 0
  %401 = vmatpush1.bf16.msra.mxu0 0
  %402 = vmatprep.subr.bf16.mxu0 0
  %403 = vmatpush1.bf16.msra.mxu0 0
  %404 = vmatprep.subr.bf16.mxu0 0
  %405 = vmatpush1.bf16.msra.mxu0 0
  %406 = vmatprep.subr.bf16.mxu0 0
  %407 = vmatpush1.bf16.msra.mxu0 0
  %408 = vmatprep.subr.bf16.mxu0 0
  %409 = vmatpush1.bf16.msra.mxu0 0
  %410 = vmatprep.subr.bf16.mxu0 0
  %411 = vmatpush1.bf16.msra.mxu0 0
  %412 = vmatprep.subr.bf16.mxu0 0
  %413 = vmatpush1.bf16.msra.mxu0 0
  %414 = vmatprep.subr.bf16.mxu0 0
  %415 = vmatpush1.bf16.msra.mxu0 0
  %416 = vmatprep.subr.bf16.mxu0 0
  %417 = vmatpush1.bf16.msra.mxu0 0
  %418 = vmatprep.subr.bf16.mxu0 0
  %419 = vmatpush1.bf16.msra.mxu0 0
  %420 = vmatprep.subr.bf16.mxu0 0
  %421 = vmatpush1.bf16.msra.mxu0 0
  %422 = vmatprep.subr.bf16.mxu0 0
  %423 = vmatpush1.bf16.msra.mxu0 0
  %424 = vmatprep.subr.bf16.mxu0 0
  %425 = vmatpush1.bf16.msra.mxu0 0
  %426 = vmatprep.subr.bf16.mxu0 0
  %427 = vmatpush1.bf16.msra.mxu0 0
  %428 = vmatprep.mubr.bf16.mxu0 0
  %429 = vmatmul.mubr.bf16.gmra.mrb[0].mxu0 %v390
  %v430 = vpop.f32.mrb[0].mxu0
  %v431 = vadd.f32 0.0, %v430
  %v432 = vpop.f32.mrb[0].mxu0
  %v433 = vpop.f32.mrb[0].mxu0
  %v434 = vadd.f32 0.0, %v433
  %v435 = vpop.f32.mrb[0].mxu0
  %436 = vdwg.mxu0
  %v437 = vld [vmem:[%s2 + $0x4] sm:$0xf]
  %v438 = vld [vmem:[%s2 + $0x1c] sm:$0xf]
  %v439 = vld [vmem:[%s2 + $0x34] sm:$0xf]
  %v440 = vld [vmem:[%s2 + $0x4c] sm:$0xf]
  %v441 = vpack.c.bf16 %v434, %v431
  %v446 = vunpack.c.l.b16 %v437
  %v447 = vunpack.c.l.b16 %v438
  %v448 = vunpack.c.l.b16 %v439
  %v449 = vunpack.c.l.b16 %v440
  %v450 = vpack.c.b16 %v447, %v446
  %v451 = vpack.c.b16 %v449, %v448
  %452 = vrot.lane.b32.xlu0 %v450, 32
  %v453 = vpop.permute.xlu0 %452
  %454 = vrot.lane.b32.xlu0 %v451, 32
  %v455 = vpop.permute.xlu0 %454
  %v459 = vsel %vm62, %v441, 0
  %461 = vmatprep.subr.bf16.mxu0 0
  %462 = vmatpush1.bf16.msra.mxu0 %v453
  %463 = vmatprep.subr.bf16.mxu0 0
  %464 = vmatpush1.bf16.msra.mxu0 %v455
  %465 = vmatprep.subr.bf16.mxu0 0
  %466 = vmatpush1.bf16.msra.mxu0 0
  %467 = vmatprep.subr.bf16.mxu0 0
  %468 = vmatpush1.bf16.msra.mxu0 0
  %469 = vmatprep.subr.bf16.mxu0 0
  %470 = vmatpush1.bf16.msra.mxu0 0
  %471 = vmatprep.subr.bf16.mxu0 0
  %472 = vmatpush1.bf16.msra.mxu0 0
  %473 = vmatprep.subr.bf16.mxu0 0
  %474 = vmatpush1.bf16.msra.mxu0 0
  %475 = vmatprep.subr.bf16.mxu0 0
  %476 = vmatpush1.bf16.msra.mxu0 0
  %477 = vmatprep.subr.bf16.mxu0 0
  %478 = vmatpush1.bf16.msra.mxu0 0
  %479 = vmatprep.subr.bf16.mxu0 0
  %480 = vmatpush1.bf16.msra.mxu0 0
  %481 = vmatprep.subr.bf16.mxu0 0
  %482 = vmatpush1.bf16.msra.mxu0 0
  %483 = vmatprep.subr.bf16.mxu0 0
  %484 = vmatpush1.bf16.msra.mxu0 0
  %485 = vmatprep.subr.bf16.mxu0 0
  %486 = vmatpush1.bf16.msra.mxu0 0
  %487 = vmatprep.subr.bf16.mxu0 0
  %488 = vmatpush1.bf16.msra.mxu0 0
  %489 = vmatprep.subr.bf16.mxu0 0
  %490 = vmatpush1.bf16.msra.mxu0 0
  %491 = vmatprep.subr.bf16.mxu0 0
  %492 = vmatpush1.bf16.msra.mxu0 0
  %493 = vmatprep.mubr.bf16.mxu0 0
  %494 = vmatmul.mubr.bf16.gmra.mrb[0].mxu0 %v459
  %v495 = vpop.f32.mrb[0].mxu0
  %v496 = vadd.f32 0.0, %v495
  %v497 = vpop.f32.mrb[0].mxu0
  %v498 = vpop.f32.mrb[0].mxu0
  %v499 = vadd.f32 0.0, %v498
  %v500 = vpop.f32.mrb[0].mxu0
  %501 = vdwg.mxu0
  %v502 = vadd.f32 %v127, %v496
  %v503 = vadd.f32 %v128, %v499
  %v504 = vld [vmem:[%s2 + $0x8] sm:$0xf]
  %v505 = vld [vmem:[%s2 + $0x20] sm:$0xf]
  %v506 = vld [vmem:[%s2 + $0x38] sm:$0xf]
  %v507 = vld [vmem:[%s2 + $0x50] sm:$0xf]
  %v508 = vpack.c.bf16 %v503, %v502
  %v513 = vunpack.c.l.b16 %v504
  %v514 = vunpack.c.l.b16 %v505
  %v515 = vunpack.c.l.b16 %v506
  %v516 = vunpack.c.l.b16 %v507
  %v517 = vpack.c.b16 %v514, %v513
  %v518 = vpack.c.b16 %v516, %v515
  %519 = vrot.lane.b32.xlu0 %v517, 96
  %v520 = vpop.permute.xlu0 %519
  %521 = vrot.lane.b32.xlu0 %v518, 96
  %v522 = vpop.permute.xlu0 %521
  %525 = vrot.lane.b32.xlu0 %v48, 96
  %v526 = vpop.permute.xlu0 %525
  %v529 = vsel %vm62, %v508, 0
  %531 = vmatprep.subr.bf16.mxu0 0
  %532 = vmatpush1.bf16.msra.mxu0 %v520
  %533 = vmatprep.subr.bf16.mxu0 0
  %534 = vmatpush1.bf16.msra.mxu0 %v522
  %535 = vmatprep.subr.bf16.mxu0 0
  %536 = vmatpush1.bf16.msra.mxu0 0
  %537 = vmatprep.subr.bf16.mxu0 0
  %538 = vmatpush1.bf16.msra.mxu0 0
  %539 = vmatprep.subr.bf16.mxu0 0
  %540 = vmatpush1.bf16.msra.mxu0 0
  %541 = vmatprep.subr.bf16.mxu0 0
  %542 = vmatpush1.bf16.msra.mxu0 0
  %543 = vmatprep.subr.bf16.mxu0 0
  %544 = vmatpush1.bf16.msra.mxu0 0
  %545 = vmatprep.subr.bf16.mxu0 0
  %546 = vmatpush1.bf16.msra.mxu0 0
  %547 = vmatprep.subr.bf16.mxu0 0
  %548 = vmatpush1.bf16.msra.mxu0 0
  %549 = vmatprep.subr.bf16.mxu0 0
  %550 = vmatpush1.bf16.msra.mxu0 0
  %551 = vmatprep.subr.bf16.mxu0 0
  %552 = vmatpush1.bf16.msra.mxu0 0
  %553 = vmatprep.subr.bf16.mxu0 0
  %554 = vmatpush1.bf16.msra.mxu0 0
  %555 = vmatprep.subr.bf16.mxu0 0
  %556 = vmatpush1.bf16.msra.mxu0 0
  %557 = vmatprep.subr.bf16.mxu0 0
  %558 = vmatpush1.bf16.msra.mxu0 0
  %559 = vmatprep.subr.bf16.mxu0 0
  %560 = vmatpush1.bf16.msra.mxu0 0
  %561 = vmatprep.subr.bf16.mxu0 0
  %562 = vmatpush1.bf16.msra.mxu0 0
  %563 = vmatprep.mubr.bf16.mxu0 0
  %564 = vmatmul.mubr.bf16.gmra.mrb[0].mxu0 %v529
  %v565 = vpop.f32.mrb[0].mxu0
  %v566 = vadd.f32 %v526, %v565
  %v567 = vpop.f32.mrb[0].mxu0
  %v568 = vpop.f32.mrb[0].mxu0
  %v569 = vadd.f32 %v526, %v568
  %v570 = vpop.f32.mrb[0].mxu0
  %571 = vdwg.mxu0
  %v572 = vmul.f32 %v566, %v566
  %v573 = vmul.f32 %v569, %v569
  %v574 = vmul.f32 %v566, %v572
  %v575 = vmul.f32 %v569, %v573
  %v576 = vmul.f32 %v574, 0.044715
  %v577 = vmul.f32 %v575, 0.044715
  %v578 = vadd.f32 %v566, %v576
  %v579 = vadd.f32 %v569, %v577
  %v580 = vmul.f32 %v578, 0.7978846
  %v581 = vmul.f32 %v579, 0.7978846
  %v582 = vtanh.pop %v580
  %v583 = vtanh.pop %v581
  %v584 = vadd.f32 %v582, 1.0
  %v585 = vadd.f32 %v583, 1.0
  %v586 = vmul.f32 %v584, 0.5
  %v587 = vmul.f32 %v585, 0.5
  %v588 = vmul.f32 %v566, %v586
  %v589 = vmul.f32 %v569, %v587
  %v590 = vpack.c.bf16 %v589, %v588
  %591 = vrot.lane.b32.xlu0 %v517, 32
  %v592 = vpop.permute.xlu0 %591
  %593 = vrot.lane.b32.xlu0 %v518, 32
  %v594 = vpop.permute.xlu0 %593
  %v598 = vsel %vm62, %v590, 0
  %600 = vmatprep.subr.bf16.mxu0 0
  %601 = vmatpush1.bf16.msra.mxu0 %v592
  %602 = vmatprep.subr.bf16.mxu0 0
  %603 = vmatpush1.bf16.msra.mxu0 %v594
  %604 = vmatprep.subr.bf16.mxu0 0
  %605 = vmatpush1.bf16.msra.mxu0 0
  %606 = vmatprep.subr.bf16.mxu0 0
  %607 = vmatpush1.bf16.msra.mxu0 0
  %608 = vmatprep.subr.bf16.mxu0 0
  %609 = vmatpush1.bf16.msra.mxu0 0
  %610 = vmatprep.subr.bf16.mxu0 0
  %611 = vmatpush1.bf16.msra.mxu0 0
  %612 = vmatprep.subr.bf16.mxu0 0
  %613 = vmatpush1.bf16.msra.mxu0 0
  %614 = vmatprep.subr.bf16.mxu0 0
  %615 = vmatpush1.bf16.msra.mxu0 0
  %616 = vmatprep.subr.bf16.mxu0 0
  %617 = vmatpush1.bf16.msra.mxu0 0
  %618 = vmatprep.subr.bf16.mxu0 0
  %619 = vmatpush1.bf16.msra.mxu0 0
  %620 = vmatprep.subr.bf16.mxu0 0
  %621 = vmatpush1.bf16.msra.mxu0 0
  %622 = vmatprep.subr.bf16.mxu0 0
  %623 = vmatpush1.bf16.msra.mxu0 0
  %624 = vmatprep.subr.bf16.mxu0 0
  %625 = vmatpush1.bf16.msra.mxu0 0
  %626 = vmatprep.subr.bf16.mxu0 0
  %627 = vmatpush1.bf16.msra.mxu0 0
  %628 = vmatprep.subr.bf16.mxu0 0
  %629 = vmatpush1.bf16.msra.mxu0 0
  %630 = vmatprep.subr.bf16.mxu0 0
  %631 = vmatpush1.bf16.msra.mxu0 0
  %632 = vmatprep.mubr.bf16.mxu0 0
  %633 = vmatmul.mubr.bf16.gmra.mrb[0].mxu0 %v598
  %v634 = vpop.f32.mrb[0].mxu0
  %v635 = vadd.f32 0.0, %v634
  %v636 = vpop.f32.mrb[0].mxu0
  %v637 = vpop.f32.mrb[0].mxu0
  %v638 = vadd.f32 0.0, %v637
  %v639 = vpop.f32.mrb[0].mxu0
  %640 = vdwg.mxu0
  %v641 = vadd.f32 %v502, %v635
  %v642 = vadd.f32 %v503, %v638
  %643 = vrot.lane.b32.xlu0 %v48, 32
  %v644 = vpop.permute.xlu0 %643
  %v646 = vadd.f32 %v641, %v644
  %v647 = vadd.f32 %v642, %v644
  %vm648 = vcmp.ge.f32.partialorder %v646, 0.0
  %vm649 = vcmp.ge.f32.partialorder %v647, 0.0
  %v650 = vmul.f32 %v646, 0.01
  %v651 = vmul.f32 %v647, 0.01
  %v652 = vsel %vm648, %v646, %v650
  %v653 = vsel %vm649, %v647, %v651
  %v654 = vld [vmem:[%s2 + $0xc] sm:$0xf]
  %v655 = vld [vmem:[%s2 + $0x24] sm:$0xf]
  %v656 = vld [vmem:[%s2 + $0x3c] sm:$0xf]
  %v657 = vld [vmem:[%s2 + $0x54] sm:$0xf]
  %v658 = vpack.c.bf16 %v653, %v652
  %v659 = vld [vmem:[%s3 + $0x1] sm:$0x1]
  %v661 = vlaneseq
  %v662 = vshrl.u32 %v661, 7
  %v663 = vsub.s32 0, %v662
  %v664 = vrot.slane %v659, %v663
  %v669 = vunpack.c.l.b16 %v654
  %v670 = vunpack.c.l.b16 %v655
  %v671 = vunpack.c.l.b16 %v656
  %v672 = vunpack.c.l.b16 %v657
  %v673 = vpack.c.b16 %v670, %v669
  %v674 = vpack.c.b16 %v672, %v671
  %675 = vrot.lane.b32.xlu0 %v673, 96
  %v676 = vpop.permute.xlu0 %675
  %677 = vrot.lane.b32.xlu0 %v674, 96
  %v678 = vpop.permute.xlu0 %677
  %681 = vrot.lane.b32.xlu0 %v664, 96
  %v682 = vpop.permute.xlu0 %681
  %v685 = vsel %vm62, %v658, 0
  %687 = vmatprep.subr.bf16.mxu0 0
  %688 = vmatpush1.bf16.msra.mxu0 %v676
  %689 = vmatprep.subr.bf16.mxu0 0
  %690 = vmatpush1.bf16.msra.mxu0 %v678
  %691 = vmatprep.subr.bf16.mxu0 0
  %692 = vmatpush1.bf16.msra.mxu0 0
  %693 = vmatprep.subr.bf16.mxu0 0
  %694 = vmatpush1.bf16.msra.mxu0 0
  %695 = vmatprep.subr.bf16.mxu0 0
  %696 = vmatpush1.bf16.msra.mxu0 0
  %697 = vmatprep.subr.bf16.mxu0 0
  %698 = vmatpush1.bf16.msra.mxu0 0
  %699 = vmatprep.subr.bf16.mxu0 0
  %700 = vmatpush1.bf16.msra.mxu0 0
  %701 = vmatprep.subr.bf16.mxu0 0
  %702 = vmatpush1.bf16.msra.mxu0 0
  %703 = vmatprep.subr.bf16.mxu0 0
  %704 = vmatpush1.bf16.msra.mxu0 0
  %705 = vmatprep.subr.bf16.mxu0 0
  %706 = vmatpush1.bf16.msra.mxu0 0
  %707 = vmatprep.subr.bf16.mxu0 0
  %708 = vmatpush1.bf16.msra.mxu0 0
  %709 = vmatprep.subr.bf16.mxu0 0
  %710 = vmatpush1.bf16.msra.mxu0 0
  %711 = vmatprep.subr.bf16.mxu0 0
  %712 = vmatpush1.bf16.msra.mxu0 0
  %713 = vmatprep.subr.bf16.mxu0 0
  %714 = vmatpush1.bf16.msra.mxu0 0
  %715 = vmatprep.subr.bf16.mxu0 0
  %716 = vmatpush1.bf16.msra.mxu0 0
  %717 = vmatprep.subr.bf16.mxu0 0
  %718 = vmatpush1.bf16.msra.mxu0 0
  %719 = vmatprep.mubr.bf16.mxu0 0
  %720 = vmatmul.mubr.bf16.gmra.mrb[0].mxu0 %v685
  %v721 = vpop.f32.mrb[0].mxu0
  %v722 = vadd.f32 %v682, %v721
  %v723 = vpop.f32.mrb[0].mxu0
  %v724 = vpop.f32.mrb[0].mxu0
  %v725 = vadd.f32 %v682, %v724
  %v726 = vpop.f32.mrb[0].mxu0
  %727 = vdwg.mxu0
  %vm728 = vcmp.ge.f32.partialorder %v722, 0.0
  %vm729 = vcmp.ge.f32.partialorder %v725, 0.0
  %v730 = vmul.f32 %v722, 0.01
  %v731 = vmul.f32 %v725, 0.01
  %v732 = vsel %vm728, %v722, %v730
  %v733 = vsel %vm729, %v725, %v731
  %v734 = vld [vmem:[%s2 + $0x10] sm:$0xf]
  %v735 = vld [vmem:[%s2 + $0x28] sm:$0xf]
  %v736 = vld [vmem:[%s2 + $0x40] sm:$0xf]
  %v737 = vld [vmem:[%s2 + $0x58] sm:$0xf]
  %v738 = vpack.c.bf16 %v733, %v732
  %v739 = vld [vmem:[%s3 + $0x2] sm:$0x1]
  %v741 = vlaneseq
  %v742 = vshrl.u32 %v741, 7
  %v743 = vsub.s32 0, %v742
  %v744 = vrot.slane %v739, %v743
  %v749 = vunpack.c.l.b16 %v734
  %v750 = vunpack.c.l.b16 %v735
  %v751 = vunpack.c.l.b16 %v736
  %v752 = vunpack.c.l.b16 %v737
  %v753 = vpack.c.b16 %v750, %v749
  %v754 = vpack.c.b16 %v752, %v751
  %755 = vrot.lane.b32.xlu0 %v753, 96
  %v756 = vpop.permute.xlu0 %755
  %757 = vrot.lane.b32.xlu0 %v754, 96
  %v758 = vpop.permute.xlu0 %757
  %761 = vrot.lane.b32.xlu0 %v744, 96
  %v762 = vpop.permute.xlu0 %761
  %v765 = vsel %vm62, %v738, 0
  %767 = vmatprep.subr.bf16.mxu0 0
  %768 = vmatpush1.bf16.msra.mxu0 %v756
  %769 = vmatprep.subr.bf16.mxu0 0
  %770 = vmatpush1.bf16.msra.mxu0 %v758
  %771 = vmatprep.subr.bf16.mxu0 0
  %772 = vmatpush1.bf16.msra.mxu0 0
  %773 = vmatprep.subr.bf16.mxu0 0
  %774 = vmatpush1.bf16.msra.mxu0 0
  %775 = vmatprep.subr.bf16.mxu0 0
  %776 = vmatpush1.bf16.msra.mxu0 0
  %777 = vmatprep.subr.bf16.mxu0 0
  %778 = vmatpush1.bf16.msra.mxu0 0
  %779 = vmatprep.subr.bf16.mxu0 0
  %780 = vmatpush1.bf16.msra.mxu0 0
  %781 = vmatprep.subr.bf16.mxu0 0
  %782 = vmatpush1.bf16.msra.mxu0 0
  %783 = vmatprep.subr.bf16.mxu0 0
  %784 = vmatpush1.bf16.msra.mxu0 0
  %785 = vmatprep.subr.bf16.mxu0 0
  %786 = vmatpush1.bf16.msra.mxu0 0
  %787 = vmatprep.subr.bf16.mxu0 0
  %788 = vmatpush1.bf16.msra.mxu0 0
  %789 = vmatprep.subr.bf16.mxu0 0
  %790 = vmatpush1.bf16.msra.mxu0 0
  %791 = vmatprep.subr.bf16.mxu0 0
  %792 = vmatpush1.bf16.msra.mxu0 0
  %793 = vmatprep.subr.bf16.mxu0 0
  %794 = vmatpush1.bf16.msra.mxu0 0
  %795 = vmatprep.subr.bf16.mxu0 0
  %796 = vmatpush1.bf16.msra.mxu0 0
  %797 = vmatprep.subr.bf16.mxu0 0
  %798 = vmatpush1.bf16.msra.mxu0 0
  %799 = vmatprep.mubr.bf16.mxu0 0
  %800 = vmatmul.mubr.bf16.gmra.mrb[0].mxu0 %v765
  %v801 = vpop.f32.mrb[0].mxu0
  %v802 = vadd.f32 %v762, %v801
  %v803 = vpop.f32.mrb[0].mxu0
  %v804 = vpop.f32.mrb[0].mxu0
  %v805 = vadd.f32 %v762, %v804
  %v806 = vpop.f32.mrb[0].mxu0
  %807 = vdwg.mxu0
  %v808 = vmax.f32 %v802, 1e-05
  %v809 = vmax.f32 %v805, 1e-05
  %v810 = vmin.f32 %v808, %v18
  %v811 = vmin.f32 %v809, %v19
  %v812 = vmax.f32 %v722, 1e-05
  %v813 = vmax.f32 %v725, 1e-05
  %v814 = vld [vmem:[%s2 + $0x14] sm:$0xf]
  %v815 = vpack.c.bf16 %v209, %v205
  %v817 = vsel %vm222, %v814, 0
  %819 = vmatprep.subr.bf16.mxu0 0
  %820 = vmatpush1.bf16.msra.mxu0 %v815
  %821 = vmatprep.subr.bf16.mxu0 0
  %822 = vmatpush1.bf16.msra.mxu0 0
  %823 = vmatprep.subr.bf16.mxu0 0
  %824 = vmatpush1.bf16.msra.mxu0 0
  %825 = vmatprep.subr.bf16.mxu0 0
  %826 = vmatpush1.bf16.msra.mxu0 0
  %827 = vmatprep.subr.bf16.mxu0 0
  %828 = vmatpush1.bf16.msra.mxu0 0
  %829 = vmatprep.subr.bf16.mxu0 0
  %830 = vmatpush1.bf16.msra.mxu0 0
  %831 = vmatprep.subr.bf16.mxu0 0
  %832 = vmatpush1.bf16.msra.mxu0 0
  %833 = vmatprep.subr.bf16.mxu0 0
  %834 = vmatpush1.bf16.msra.mxu0 0
  %835 = vmatprep.subr.bf16.mxu0 0
  %836 = vmatpush1.bf16.msra.mxu0 0
  %837 = vmatprep.subr.bf16.mxu0 0
  %838 = vmatpush1.bf16.msra.mxu0 0
  %839 = vmatprep.subr.bf16.mxu0 0
  %840 = vmatpush1.bf16.msra.mxu0 0
  %841 = vmatprep.subr.bf16.mxu0 0
  %842 = vmatpush1.bf16.msra.mxu0 0
  %843 = vmatprep.subr.bf16.mxu0 0
  %844 = vmatpush1.bf16.msra.mxu0 0
  %845 = vmatprep.subr.bf16.mxu0 0
  %846 = vmatpush1.bf16.msra.mxu0 0
  %847 = vmatprep.subr.bf16.mxu0 0
  %848 = vmatpush1.bf16.msra.mxu0 0
  %849 = vmatprep.subr.bf16.mxu0 0
  %850 = vmatpush1.bf16.msra.mxu0 0
  %851 = vmatprep.mubr.bf16.mxu0 0
  %852 = vmatmul.mubr.bf16.gmra.mrb[0].mxu0 %v817
  %v853 = vpop.f32.mrb[0].mxu0
  %v854 = vadd.f32 0.0, %v853
  %v855 = vpop.f32.mrb[0].mxu0
  %v856 = vpop.f32.mrb[0].mxu0
  %v857 = vpop.f32.mrb[0].mxu0
  %858 = vdwg.mxu0
  %v860 = vunpack.c.l.b16 %v814
  %v861 = vpack.c.b16 %v860, %v860
  %862 = vrot.lane.b32.xlu0 %v861, 112
  %v863 = vpop.permute.xlu0 %862
  %865 = vrot.lane.b32.xlu0 %v815, 96
  %v866 = vpop.permute.xlu0 %865
  %v869 = vsel %vm222, %v863, 0
  %871 = vmatprep.subr.bf16.mxu0 0
  %872 = vmatpush1.bf16.msra.mxu0 %v866
  %873 = vmatprep.subr.bf16.mxu0 0
  %874 = vmatpush1.bf16.msra.mxu0 0
  %875 = vmatprep.subr.bf16.mxu0 0
  %876 = vmatpush1.bf16.msra.mxu0 0
  %877 = vmatprep.subr.bf16.mxu0 0
  %878 = vmatpush1.bf16.msra.mxu0 0
  %879 = vmatprep.subr.bf16.mxu0 0
  %880 = vmatpush1.bf16.msra.mxu0 0
  %881 = vmatprep.subr.bf16.mxu0 0
  %882 = vmatpush1.bf16.msra.mxu0 0
  %883 = vmatprep.subr.bf16.mxu0 0
  %884 = vmatpush1.bf16.msra.mxu0 0
  %885 = vmatprep.subr.bf16.mxu0 0
  %886 = vmatpush1.bf16.msra.mxu0 0
  %887 = vmatprep.subr.bf16.mxu0 0
  %888 = vmatpush1.bf16.msra.mxu0 0
  %889 = vmatprep.subr.bf16.mxu0 0
  %890 = vmatpush1.bf16.msra.mxu0 0
  %891 = vmatprep.subr.bf16.mxu0 0
  %892 = vmatpush1.bf16.msra.mxu0 0
  %893 = vmatprep.subr.bf16.mxu0 0
  %894 = vmatpush1.bf16.msra.mxu0 0
  %895 = vmatprep.subr.bf16.mxu0 0
  %896 = vmatpush1.bf16.msra.mxu0 0
  %897 = vmatprep.subr.bf16.mxu0 0
  %898 = vmatpush1.bf16.msra.mxu0 0
  %899 = vmatprep.subr.bf16.mxu0 0
  %900 = vmatpush1.bf16.msra.mxu0 0
  %901 = vmatprep.subr.bf16.mxu0 0
  %902 = vmatpush1.bf16.msra.mxu0 0
  %903 = vmatprep.mubr.bf16.mxu0 0
  %904 = vmatmul.mubr.bf16.gmra.mrb[0].mxu0 %v869
  %v905 = vpop.f32.mrb[0].mxu0
  %v906 = vadd.f32 0.0, %v905
  %v907 = vpop.f32.mrb[0].mxu0
  %v908 = vpop.f32.mrb[0].mxu0
  %v909 = vpop.f32.mrb[0].mxu0
  %910 = vdwg.mxu0
  %v911 = vpack.c.bf16 %v854, %v854
  %912 = vrot.lane.b32.xlu0 %v212, 32
  %v913 = vpop.permute.xlu0 %912
  %v915 = vsel %vm62, %v913, 0
  %v918 = vsel %vm62, %v911, 0
  %920 = vmatprep.subr.bf16.mxu0 0
  %921 = vmatpush1.bf16.xpose.msra.mxu0 %v918
  %922 = vmatprep.subr.bf16.mxu0 0
  %923 = vmatpush1.bf16.xpose.msra.mxu0 0
  %924 = vmatprep.subr.bf16.mxu0 0
  %925 = vmatpush1.bf16.xpose.msra.mxu0 0
  %926 = vmatprep.subr.bf16.mxu0 0
  %927 = vmatpush1.bf16.xpose.msra.mxu0 0
  %928 = vmatprep.subr.bf16.mxu0 0
  %929 = vmatpush1.bf16.xpose.msra.mxu0 0
  %930 = vmatprep.subr.bf16.mxu0 0
  %931 = vmatpush1.bf16.xpose.msra.mxu0 0
  %932 = vmatprep.subr.bf16.mxu0 0
  %933 = vmatpush1.bf16.xpose.msra.mxu0 0
  %934 = vmatprep.subr.bf16.mxu0 0
  %935 = vmatpush1.bf16.xpose.msra.mxu0 0
  %936 = vmatprep.subr.bf16.mxu0 0
  %937 = vmatpush1.bf16.xpose.msra.mxu0 0
  %938 = vmatprep.subr.bf16.mxu0 0
  %939 = vmatpush1.bf16.xpose.msra.mxu0 0
  %940 = vmatprep.subr.bf16.mxu0 0
  %941 = vmatpush1.bf16.xpose.msra.mxu0 0
  %942 = vmatprep.subr.bf16.mxu0 0
  %943 = vmatpush1.bf16.xpose.msra.mxu0 0
  %944 = vmatprep.subr.bf16.mxu0 0
  %945 = vmatpush1.bf16.xpose.msra.mxu0 0
  %946 = vmatprep.subr.bf16.mxu0 0
  %947 = vmatpush1.bf16.xpose.msra.mxu0 0
  %948 = vmatprep.subr.bf16.mxu0 0
  %949 = vmatpush1.bf16.xpose.msra.mxu0 0
  %950 = vmatprep.subr.bf16.mxu0 0
  %951 = vmatpush1.bf16.xpose.msra.mxu0 0
  %952 = vmatprep.mubr.bf16.mxu0 0
  %953 = vmatmul.mubr.bf16.gmra.mrb[0].mxu0 %v915
  %v954 = vpop.f32.mrb[0].mxu0
  %v955 = vadd.f32 0.0, %v954
  %v956 = vpop.f32.mrb[0].mxu0
  %v957 = vpop.f32.mrb[0].mxu0
  %v958 = vadd.f32 0.0, %v957
  %v959 = vpop.f32.mrb[0].mxu0
  %960 = vdwg.mxu0
  %v961 = vmul.f32 %v955, 0.18898223
  %v962 = vmul.f32 %v958, 0.18898223
  %v963 = vsel %vm364, %v961, -inf
  %964 = vmax.xlane.f32.xlu0 %v963
  %v965 = vpop.xlane.xlu0 %964
  %v966 = vsel %vm364, %v962, -inf
  %967 = vmax.xlane.f32.xlu0 %v966
  %v968 = vpop.xlane.xlu0 %967
  %v969 = vsub.f32 %v961, %v965
  %v970 = vsub.f32 %v962, %v968
  %v971 = vmul.f32 %v969, 1.442695
  %v972 = vpow.pop %v971
  %v973 = vmul.f32 %v970, 1.442695
  %v974 = vpow.pop %v973
  %v975 = vsel %vm364, %v972, 0.0
  %976 = vadd.xlane.f32.xlu0 %v975
  %v977 = vpop.xlane.xlu0 %976
  %v978 = vsel %vm364, %v974, 0.0
  %979 = vadd.xlane.f32.xlu0 %v978
  %v980 = vpop.xlane.xlu0 %979
  %v981 = vrcp.pop %v977
  %v982 = vmul.f32 %v972, %v981
  %v983 = vrcp.pop %v980
  %v984 = vmul.f32 %v974, %v983
  %v985 = vpack.c.bf16 %v984, %v982
  %v986 = vpack.c.bf16 %v906, %v906
  %v988 = vsel %vm364, %v985, 0
  %v991 = vsel %vm392, %v986, 0
  %993 = vmatprep.subr.bf16.mxu0 0
  %994 = vmatpush1.bf16.msra.mxu0 %v991
  %995 = vmatprep.subr.bf16.mxu0 0
  %996 = vmatpush1.bf16.msra.mxu0 0
  %997 = vmatprep.subr.bf16.mxu0 0
  %998 = vmatpush1.bf16.msra.mxu0 0
  %999 = vmatprep.subr.bf16.mxu0 0
  %1000 = vmatpush1.bf16.msra.mxu0 0
  %1001 = vmatprep.subr.bf16.mxu0 0
  %1002 = vmatpush1.bf16.msra.mxu0 0
  %1003 = vmatprep.subr.bf16.mxu0 0
  %1004 = vmatpush1.bf16.msra.mxu0 0
  %1005 = vmatprep.subr.bf16.mxu0 0
  %1006 = vmatpush1.bf16.msra.mxu0 0
  %1007 = vmatprep.subr.bf16.mxu0 0
  %1008 = vmatpush1.bf16.msra.mxu0 0
  %1009 = vmatprep.subr.bf16.mxu0 0
  %1010 = vmatpush1.bf16.msra.mxu0 0
  %1011 = vmatprep.subr.bf16.mxu0 0
  %1012 = vmatpush1.bf16.msra.mxu0 0
  %1013 = vmatprep.subr.bf16.mxu0 0
  %1014 = vmatpush1.bf16.msra.mxu0 0
  %1015 = vmatprep.subr.bf16.mxu0 0
  %1016 = vmatpush1.bf16.msra.mxu0 0
  %1017 = vmatprep.subr.bf16.mxu0 0
  %1018 = vmatpush1.bf16.msra.mxu0 0
  %1019 = vmatprep.subr.bf16.mxu0 0
  %1020 = vmatpush1.bf16.msra.mxu0 0
  %1021 = vmatprep.subr.bf16.mxu0 0
  %1022 = vmatpush1.bf16.msra.mxu0 0
  %1023 = vmatprep.subr.bf16.mxu0 0
  %1024 = vmatpush1.bf16.msra.mxu0 0
  %1025 = vmatprep.mubr.bf16.mxu0 0
  %1026 = vmatmul.mubr.bf16.gmra.mrb[0].mxu0 %v988
  %v1027 = vpop.f32.mrb[0].mxu0
  %v1028 = vadd.f32 0.0, %v1027
  %v1029 = vpop.f32.mrb[0].mxu0
  %v1030 = vpop.f32.mrb[0].mxu0
  %v1031 = vadd.f32 0.0, %v1030
  %v1032 = vpop.f32.mrb[0].mxu0
  %1033 = vdwg.mxu0
  %v1034 = vpack.c.bf16 %v1031, %v1028
  %v1038 = vsel %vm62, %v1034, 0
  %1040 = vmatprep.subr.bf16.mxu0 0
  %1041 = vmatpush1.bf16.msra.mxu0 %v517
  %1042 = vmatprep.subr.bf16.mxu0 0
  %1043 = vmatpush1.bf16.msra.mxu0 %v518
  %1044 = vmatprep.subr.bf16.mxu0 0
  %1045 = vmatpush1.bf16.msra.mxu0 0
  %1046 = vmatprep.subr.bf16.mxu0 0
  %1047 = vmatpush1.bf16.msra.mxu0 0
  %1048 = vmatprep.subr.bf16.mxu0 0
  %1049 = vmatpush1.bf16.msra.mxu0 0
  %1050 = vmatprep.subr.bf16.mxu0 0
  %1051 = vmatpush1.bf16.msra.mxu0 0
  %1052 = vmatprep.subr.bf16.mxu0 0
  %1053 = vmatpush1.bf16.msra.mxu0 0
  %1054 = vmatprep.subr.bf16.mxu0 0
  %1055 = vmatpush1.bf16.msra.mxu0 0
  %1056 = vmatprep.subr.bf16.mxu0 0
  %1057 = vmatpush1.bf16.msra.mxu0 0
  %1058 = vmatprep.subr.bf16.mxu0 0
  %1059 = vmatpush1.bf16.msra.mxu0 0
  %1060 = vmatprep.subr.bf16.mxu0 0
  %1061 = vmatpush1.bf16.msra.mxu0 0
  %1062 = vmatprep.subr.bf16.mxu0 0
  %1063 = vmatpush1.bf16.msra.mxu0 0
  %1064 = vmatprep.subr.bf16.mxu0 0
  %1065 = vmatpush1.bf16.msra.mxu0 0
  %1066 = vmatprep.subr.bf16.mxu0 0
  %1067 = vmatpush1.bf16.msra.mxu0 0
  %1068 = vmatprep.subr.bf16.mxu0 0
  %1069 = vmatpush1.bf16.msra.mxu0 0
  %1070 = vmatprep.subr.bf16.mxu0 0
  %1071 = vmatpush1.bf16.msra.mxu0 0
  %1072 = vmatprep.mubr.bf16.mxu0 0
  %1073 = vmatmul.mubr.bf16.gmra.mrb[0].mxu0 %v1038
  %v1074 = vpop.f32.mrb[0].mxu0
  %v1075 = vadd.f32 0.0, %v1074
  %v1076 = vpop.f32.mrb[0].mxu0
  %v1077 = vpop.f32.mrb[0].mxu0
  %v1078 = vadd.f32 0.0, %v1077
  %v1079 = vpop.f32.mrb[0].mxu0
  %1080 = vdwg.mxu0
  %v1081 = vadd.f32 %v127, %v1075
  %v1082 = vadd.f32 %v128, %v1078
  %v1083 = vpack.c.bf16 %v1082, %v1081
  %1084 = vrot.lane.b32.xlu0 %v517, 64
  %v1085 = vpop.permute.xlu0 %1084
  %1086 = vrot.lane.b32.xlu0 %v518, 64
  %v1087 = vpop.permute.xlu0 %1086
  %1090 = vrot.lane.b32.xlu0 %v48, 64
  %v1091 = vpop.permute.xlu0 %1090
  %v1094 = vsel %vm62, %v1083, 0
  %1096 = vmatprep.subr.bf16.mxu0 0
  %1097 = vmatpush1.bf16.msra.mxu0 %v1085
  %1098 = vmatprep.subr.bf16.mxu0 0
  %1099 = vmatpush1.bf16.msra.mxu0 %v1087
  %1100 = vmatprep.subr.bf16.mxu0 0
  %1101 = vmatpush1.bf16.msra.mxu0 0
  %1102 = vmatprep.subr.bf16.mxu0 0
  %1103 = vmatpush1.bf16.msra.mxu0 0
  %1104 = vmatprep.subr.bf16.mxu0 0
  %1105 = vmatpush1.bf16.msra.mxu0 0
  %1106 = vmatprep.subr.bf16.mxu0 0
  %1107 = vmatpush1.bf16.msra.mxu0 0
  %1108 = vmatprep.subr.bf16.mxu0 0
  %1109 = vmatpush1.bf16.msra.mxu0 0
  %1110 = vmatprep.subr.bf16.mxu0 0
  %1111 = vmatpush1.bf16.msra.mxu0 0
  %1112 = vmatprep.subr.bf16.mxu0 0
  %1113 = vmatpush1.bf16.msra.mxu0 0
  %1114 = vmatprep.subr.bf16.mxu0 0
  %1115 = vmatpush1.bf16.msra.mxu0 0
  %1116 = vmatprep.subr.bf16.mxu0 0
  %1117 = vmatpush1.bf16.msra.mxu0 0
  %1118 = vmatprep.subr.bf16.mxu0 0
  %1119 = vmatpush1.bf16.msra.mxu0 0
  %1120 = vmatprep.subr.bf16.mxu0 0
  %1121 = vmatpush1.bf16.msra.mxu0 0
  %1122 = vmatprep.subr.bf16.mxu0 0
  %1123 = vmatpush1.bf16.msra.mxu0 0
  %1124 = vmatprep.subr.bf16.mxu0 0
  %1125 = vmatpush1.bf16.msra.mxu0 0
  %1126 = vmatprep.subr.bf16.mxu0 0
  %1127 = vmatpush1.bf16.msra.mxu0 0
  %1128 = vmatprep.mubr.bf16.mxu0 0
  %1129 = vmatmul.mubr.bf16.gmra.mrb[0].mxu0 %v1094
  %v1130 = vpop.f32.mrb[0].mxu0
  %v1131 = vadd.f32 %v1091, %v1130
  %v1132 = vpop.f32.mrb[0].mxu0
  %v1133 = vpop.f32.mrb[0].mxu0
  %v1134 = vadd.f32 %v1091, %v1133
  %v1135 = vpop.f32.mrb[0].mxu0
  %1136 = vdwg.mxu0
  %v1137 = vmul.f32 %v1131, %v1131
  %v1138 = vmul.f32 %v1134, %v1134
  %v1139 = vmul.f32 %v1131, %v1137
  %v1140 = vmul.f32 %v1134, %v1138
  %v1141 = vmul.f32 %v1139, 0.044715
  %v1142 = vmul.f32 %v1140, 0.044715
  %v1143 = vadd.f32 %v1131, %v1141
  %v1144 = vadd.f32 %v1134, %v1142
  %v1145 = vmul.f32 %v1143, 0.7978846
  %v1146 = vmul.f32 %v1144, 0.7978846
  %v1147 = vtanh.pop %v1145
  %v1148 = vtanh.pop %v1146
  %v1149 = vadd.f32 %v1147, 1.0
  %v1150 = vadd.f32 %v1148, 1.0
  %v1151 = vmul.f32 %v1149, 0.5
  %v1152 = vmul.f32 %v1150, 0.5
  %v1153 = vmul.f32 %v1131, %v1151
  %v1154 = vmul.f32 %v1134, %v1152
  %v1155 = vpack.c.bf16 %v1154, %v1153
  %v1159 = vsel %vm62, %v1155, 0
  %1161 = vmatprep.subr.bf16.mxu0 0
  %1162 = vmatpush1.bf16.msra.mxu0 %v673
  %1163 = vmatprep.subr.bf16.mxu0 0
  %1164 = vmatpush1.bf16.msra.mxu0 %v674
  %1165 = vmatprep.subr.bf16.mxu0 0
  %1166 = vmatpush1.bf16.msra.mxu0 0
  %1167 = vmatprep.subr.bf16.mxu0 0
  %1168 = vmatpush1.bf16.msra.mxu0 0
  %1169 = vmatprep.subr.bf16.mxu0 0
  %1170 = vmatpush1.bf16.msra.mxu0 0
  %1171 = vmatprep.subr.bf16.mxu0 0
  %1172 = vmatpush1.bf16.msra.mxu0 0
  %1173 = vmatprep.subr.bf16.mxu0 0
  %1174 = vmatpush1.bf16.msra.mxu0 0
  %1175 = vmatprep.subr.bf16.mxu0 0
  %1176 = vmatpush1.bf16.msra.mxu0 0
  %1177 = vmatprep.subr.bf16.mxu0 0
  %1178 = vmatpush1.bf16.msra.mxu0 0
  %1179 = vmatprep.subr.bf16.mxu0 0
  %1180 = vmatpush1.bf16.msra.mxu0 0
  %1181 = vmatprep.subr.bf16.mxu0 0
  %1182 = vmatpush1.bf16.msra.mxu0 0
  %1183 = vmatprep.subr.bf16.mxu0 0
  %1184 = vmatpush1.bf16.msra.mxu0 0
  %1185 = vmatprep.subr.bf16.mxu0 0
  %1186 = vmatpush1.bf16.msra.mxu0 0
  %1187 = vmatprep.subr.bf16.mxu0 0
  %1188 = vmatpush1.bf16.msra.mxu0 0
  %1189 = vmatprep.subr.bf16.mxu0 0
  %1190 = vmatpush1.bf16.msra.mxu0 0
  %1191 = vmatprep.subr.bf16.mxu0 0
  %1192 = vmatpush1.bf16.msra.mxu0 0
  %1193 = vmatprep.mubr.bf16.mxu0 0
  %1194 = vmatmul.mubr.bf16.gmra.mrb[0].mxu0 %v1159
  %v1195 = vpop.f32.mrb[0].mxu0
  %v1196 = vadd.f32 0.0, %v1195
  %v1197 = vpop.f32.mrb[0].mxu0
  %v1198 = vpop.f32.mrb[0].mxu0
  %v1199 = vadd.f32 0.0, %v1198
  %v1200 = vpop.f32.mrb[0].mxu0
  %1201 = vdwg.mxu0
  %v1202 = vadd.f32 %v1081, %v1196
  %v1203 = vadd.f32 %v1082, %v1199
  %v1205 = vadd.f32 %v1202, %v664
  %v1206 = vadd.f32 %v1203, %v664
  %vm1207 = vcmp.ge.f32.partialorder %v1205, 0.0
  %vm1208 = vcmp.ge.f32.partialorder %v1206, 0.0
  %v1209 = vmul.f32 %v1205, 0.01
  %v1210 = vmul.f32 %v1206, 0.01
  %v1211 = vsel %vm1207, %v1205, %v1209
  %v1212 = vsel %vm1208, %v1206, %v1210
  %v1213 = vld [vmem:[%s2 + $0xc] sm:$0xff]
  %v1214 = vld [vmem:[%s2 + $0x24] sm:$0xff]
  %v1215 = vld [vmem:[%s2 + $0x3c] sm:$0xff]
  %v1216 = vld [vmem:[%s2 + $0x54] sm:$0xff]
  %v1217 = vpack.c.bf16 %v1212, %v1211
  %v1218 = vld [vmem:[%s3 + $0x1] sm:$0x3]
  %v1220 = vlaneseq
  %v1221 = vshrl.u32 %v1220, 7
  %v1222 = vsub.s32 0, %v1221
  %v1223 = vrot.slane %v1218, %v1222
  %v1224 = vlaneseq
  %v1225 = vshrl.u32 %v1224, 7
  %v1226 = vsub.s32 1, %v1225
  %v1227 = vrot.slane %v1218, %v1226
  %v1232 = vunpack.c.l.b16 %v1213
  %v1233 = vunpack.c.h.b16 %v1213
  %v1234 = vunpack.c.l.b16 %v1214
  %v1235 = vunpack.c.h.b16 %v1214
  %v1236 = vunpack.c.l.b16 %v1215
  %v1237 = vunpack.c.h.b16 %v1215
  %v1238 = vunpack.c.l.b16 %v1216
  %v1239 = vunpack.c.h.b16 %v1216
  %v1240 = vpack.c.b16 %v1234, %v1232
  %v1241 = vpack.c.b16 %v1235, %v1233
  %v1242 = vpack.c.b16 %v1238, %v1236
  %v1243 = vpack.c.b16 %v1239, %v1237
  %1244 = vrot.lane.b32.xlu0 %v1240, 32
  %v1245 = vpop.permute.xlu0 %1244
  %1246 = vrot.lane.b32.xlu0 %v1241, 32
  %v1247 = vpop.permute.xlu0 %1246
  %1248 = vrot.lane.b32.xlu0 %v1242, 32
  %v1249 = vpop.permute.xlu0 %1248
  %1250 = vrot.lane.b32.xlu0 %v1243, 32
  %v1251 = vpop.permute.xlu0 %1250
  %vm1252 = vcmask 261120
  %v1253 = vsel %vm1252, %v1245, %v1247
  %v1254 = vsel %vm1252, %v1249, %v1251
  %1257 = vrot.lane.b32.xlu0 %v1223, 32
  %v1258 = vpop.permute.xlu0 %1257
  %1259 = vrot.lane.b32.xlu0 %v1227, 32
  %v1260 = vpop.permute.xlu0 %1259
  %v1261 = vsel %vm62, %v1258, %v1260
  %v1264 = vsel %vm62, %v1217, 0
  %1266 = vmatprep.subr.bf16.mxu0 0
  %1267 = vmatpush1.bf16.msra.mxu0 %v1253
  %1268 = vmatprep.subr.bf16.mxu0 0
  %1269 = vmatpush1.bf16.msra.mxu0 %v1254
  %1270 = vmatprep.subr.bf16.mxu0 0
  %1271 = vmatpush1.bf16.msra.mxu0 0
  %1272 = vmatprep.subr.bf16.mxu0 0
  %1273 = vmatpush1.bf16.msra.mxu0 0
  %1274 = vmatprep.subr.bf16.mxu0 0
  %1275 = vmatpush1.bf16.msra.mxu0 0
  %1276 = vmatprep.subr.bf16.mxu0 0
  %1277 = vmatpush1.bf16.msra.mxu0 0
  %1278 = vmatprep.subr.bf16.mxu0 0
  %1279 = vmatpush1.bf16.msra.mxu0 0
  %1280 = vmatprep.subr.bf16.mxu0 0
  %1281 = vmatpush1.bf16.msra.mxu0 0
  %1282 = vmatprep.subr.bf16.mxu0 0
  %1283 = vmatpush1.bf16.msra.mxu0 0
  %1284 = vmatprep.subr.bf16.mxu0 0
  %1285 = vmatpush1.bf16.msra.mxu0 0
  %1286 = vmatprep.subr.bf16.mxu0 0
  %1287 = vmatpush1.bf16.msra.mxu0 0
  %1288 = vmatprep.subr.bf16.mxu0 0
  %1289 = vmatpush1.bf16.msra.mxu0 0
  %1290 = vmatprep.subr.bf16.mxu0 0
  %1291 = vmatpush1.bf16.msra.mxu0 0
  %1292 = vmatprep.subr.bf16.mxu0 0
  %1293 = vmatpush1.bf16.msra.mxu0 0
  %1294 = vmatprep.subr.bf16.mxu0 0
  %1295 = vmatpush1.bf16.msra.mxu0 0
  %1296 = vmatprep.subr.bf16.mxu0 0
  %1297 = vmatpush1.bf16.msra.mxu0 0
  %1298 = vmatprep.mubr.bf16.mxu0 0
  %1299 = vmatmul.mubr.bf16.gmra.mrb[0].mxu0 %v1264
  %v1300 = vpop.f32.mrb[0].mxu0
  %v1301 = vadd.f32 %v1261, %v1300
  %v1302 = vpop.f32.mrb[0].mxu0
  %v1303 = vpop.f32.mrb[0].mxu0
  %v1304 = vadd.f32 %v1261, %v1303
  %v1305 = vpop.f32.mrb[0].mxu0
  %1306 = vdwg.mxu0
  %vm1307 = vcmp.ge.f32.partialorder %v1301, 0.0
  %vm1308 = vcmp.ge.f32.partialorder %v1304, 0.0
  %v1309 = vmul.f32 %v1301, 0.01
  %v1310 = vmul.f32 %v1304, 0.01
  %v1311 = vsel %vm1307, %v1301, %v1309
  %v1312 = vsel %vm1308, %v1304, %v1310
  %v1313 = vpack.c.bf16 %v1312, %v1311
  %1314 = vrot.lane.b32.xlu0 %v753, 64
  %v1315 = vpop.permute.xlu0 %1314
  %1316 = vrot.lane.b32.xlu0 %v754, 64
  %v1317 = vpop.permute.xlu0 %1316
  %1320 = vrot.lane.b32.xlu0 %v744, 64
  %v1321 = vpop.permute.xlu0 %1320
  %v1324 = vsel %vm62, %v1313, 0
  %1326 = vmatprep.subr.bf16.mxu0 0
  %1327 = vmatpush1.bf16.msra.mxu0 %v1315
  %1328 = vmatprep.subr.bf16.mxu0 0
  %1329 = vmatpush1.bf16.msra.mxu0 %v1317
  %1330 = vmatprep.subr.bf16.mxu0 0
  %1331 = vmatpush1.bf16.msra.mxu0 0
  %1332 = vmatprep.subr.bf16.mxu0 0
  %1333 = vmatpush1.bf16.msra.mxu0 0
  %1334 = vmatprep.subr.bf16.mxu0 0
  %1335 = vmatpush1.bf16.msra.mxu0 0
  %1336 = vmatprep.subr.bf16.mxu0 0
  %1337 = vmatpush1.bf16.msra.mxu0 0
  %1338 = vmatprep.subr.bf16.mxu0 0
  %1339 = vmatpush1.bf16.msra.mxu0 0
  %1340 = vmatprep.subr.bf16.mxu0 0
  %1341 = vmatpush1.bf16.msra.mxu0 0
  %1342 = vmatprep.subr.bf16.mxu0 0
  %1343 = vmatpush1.bf16.msra.mxu0 0
  %1344 = vmatprep.subr.bf16.mxu0 0
  %1345 = vmatpush1.bf16.msra.mxu0 0
  %1346 = vmatprep.subr.bf16.mxu0 0
  %1347 = vmatpush1.bf16.msra.mxu0 0
  %1348 = vmatprep.subr.bf16.mxu0 0
  %1349 = vmatpush1.bf16.msra.mxu0 0
  %1350 = vmatprep.subr.bf16.mxu0 0
  %1351 = vmatpush1.bf16.msra.mxu0 0
  %1352 = vmatprep.subr.bf16.mxu0 0
  %1353 = vmatpush1.bf16.msra.mxu0 0
  %1354 = vmatprep.subr.bf16.mxu0 0
  %1355 = vmatpush1.bf16.msra.mxu0 0
  %1356 = vmatprep.subr.bf16.mxu0 0
  %1357 = vmatpush1.bf16.msra.mxu0 0
  %1358 = vmatprep.mubr.bf16.mxu0 0
  %1359 = vmatmul.mubr.bf16.gmra.mrb[0].mxu0 %v1324
  %v1360 = vpop.f32.mrb[0].mxu0
  %v1361 = vadd.f32 %v1321, %v1360
  %v1362 = vpop.f32.mrb[0].mxu0
  %v1363 = vpop.f32.mrb[0].mxu0
  %v1364 = vadd.f32 %v1321, %v1363
  %v1365 = vpop.f32.mrb[0].mxu0
  %1366 = vdwg.mxu0
  %v1367 = vmax.f32 %v1361, 1e-05
  %v1368 = vmax.f32 %v1364, 1e-05
  %v1369 = vmin.f32 %v1367, %v18
  %v1370 = vmin.f32 %v1368, %v19
  %v1371 = vmax.f32 %v1301, 1e-05
  %v1372 = vmax.f32 %v1304, 1e-05
  %1375 = vrot.lane.b32.xlu0 %v1369, 64
  %v1376 = vpop.permute.xlu0 %1375
  %1377 = vrot.lane.b32.xlu0 %v1370, 64
  %v1378 = vpop.permute.xlu0 %1377
  %1383 = vrot.lane.b32.xlu0 %v1371, 64
  %v1384 = vpop.permute.xlu0 %1383
  %1385 = vrot.lane.b32.xlu0 %v1372, 64
  %v1386 = vpop.permute.xlu0 %1385
  %v1389 = vsel %vm62, %v810, %v812
  %v1390 = vsel %vm62, %v811, %v813
  %vm1391 = vcmask 523264
  %v1392 = vsel %vm1391, %v1389, %v1376
  %v1393 = vsel %vm1391, %v1390, %v1378
  %vm1394 = vcmask 785408
  %v1395 = vsel %vm1394, %v1392, %v1384
  %v1396 = vsel %vm1394, %v1393, %v1386
  %1397 = vst [vmem:[%s4] sm:$0xff] %v1395
  %1398 = vst [vmem:[%s4 + $0x8] sm:$0xff] %v1396
  // Predicated region
  $region14: #{_forward_batched_jit.1} parent=0 // pred_check
    _
  $region15: #{_forward_batched_jit.1} parent=0 // pred_check_branch
    %1400 = sbr.rel (0) target = $region17
  $region16: #{_forward_batched_jit.1} parent=0 // pred_region
    _
  $region17: #{_forward_batched_jit.1} parent=0 // pred_fallthru
    _
  // Predicated region
  $region18: #{_forward_batched_jit.1} parent=0 // pred_check
    _
  $region19: #{_forward_batched_jit.1} parent=0 // pred_check_branch
    %1402 = sbr.rel (0) target = $region21
  $region20: #{_forward_batched_jit.1} parent=0 // pred_region
    _
  $region21: #{_forward_batched_jit.1} parent=0 // pred_fallthru
    _

</llo_original>
